<compile_context>
chip_gen: v7x
topology: tpu7x:2x2x1
jax: 0.10.0
libtpu: 0.0.40
codegen_flags: <defaults>
</compile_context>

<pallas_src>
import numpy as np
import jax
import jax.numpy as jnp
from jax.experimental import pallas as pl
from jax.experimental.pallas import tpu as pltpu

# ---- hyper-parameters (small, consistent with the PyTorch module) ----------
N_FILTERS = 4            # nFilters
KER = 12                 # KerSize (so conv1 output[:, :, :-1] has length 128)
FH0, FH1 = 32, 16        # fullyhiddensize
DIM_EMBED = 8            # Dim_embed
LSTM_H = 16              # lstmhiddensize
N_REC = 2                # nreclayer (kernel hardcodes 2 layers)
L = 128                  # piano-roll dimension (fixed by the module)
BN_EPS = 1e-5
PAD = 6                  # conv1 padding
DEC_PAD = 5              # deconv1 padding
DPAD = KER - 1 - DEC_PAD # = 6, equivalent "full conv" pad used by the reference

F32 = jnp.float32
_VMEM_SPEC = pl.BlockSpec(memory_space=pltpu.MemorySpace.VMEM)

assert N_REC == 2, "fused kernel hardcodes 2 LSTM layers"
# TODO(synk): attention=False path (LSTM over the rho-long window) not implemented.


# ------------------------------ shared encoder body ---------------------------
def _encoder_body(x, bconv, cbvec, g, gt, bngv, bnbv, w1t, b1, w2t, b2, w3t, b3):
    """x: (N, L) f32 -> outfin (N, DIM_EMBED). All operands are VMEM values."""
    n = x.shape[0]
    # Conv1d(pad=6)[:, :, :-1] as one band-matrix MXU matmul, channel-major output.
    conv = jnp.dot(x, bconv, preferred_element_type=F32) + cbvec          # (N, NF*L)

    # BatchNorm1d (training-mode batch stats), rank-NF factorized per-channel
    # reduce/broadcast:  mu_v = ((rowsum @ g) * inv_cnt) @ g.T
    inv_cnt = 1.0 / (n * L)
    s1 = jnp.sum(conv, axis=0, keepdims=True)                             # (1, NF*L)
    s2 = jnp.sum(conv * conv, axis=0, keepdims=True)
    mu_c = jnp.dot(s1, g, preferred_element_type=F32) * inv_cnt           # (1, NF)
    ex2_c = jnp.dot(s2, g, preferred_element_type=F32) * inv_cnt          # (1, NF)
    mu_v = jnp.dot(mu_c, gt, preferred_element_type=F32)                  # (1, NF*L)
    ex2_v = jnp.dot(ex2_c, gt, preferred_element_type=F32)
    var_v = ex2_v - mu_v * mu_v
    scale_v = bngv * jax.lax.rsqrt(var_v + BN_EPS)
    shift_v = bnbv - mu_v * scale_v
    h = jnp.maximum(conv * scale_v + shift_v, 0.0)                        # ReLU, (N, NF*L)

    # MLP head: single K=512 Linear1, then Linear2, Linear3 (weights pre-transposed).
    h1 = jnp.maximum(jnp.dot(h, w1t, preferred_element_type=F32) + b1, 0.0)
    h2 = jnp.maximum(jnp.dot(h1, w2t, preferred_element_type=F32) + b2, 0.0)
    return jnp.dot(h2, w3t, preferred_element_type=F32) + b3              # (N, E)


# -------------------------- encoder-only kernel (rho <= 0) --------------------
def _encoder_kernel(x_ref, bconv_ref, cbvec_ref, g_ref, gt_ref, bngv_ref, bnbv_ref,
                    w1t_ref, b1_ref, w2t_ref, b2_ref, w3t_ref, b3_ref, outfin_ref):
    outfin_ref[...] = _encoder_body(
        x_ref[...], bconv_ref[...], cbvec_ref[...], g_ref[...], gt_ref[...],
        bngv_ref[...], bnbv_ref[...], w1t_ref[...], b1_ref[...],
        w2t_ref[...], b2_ref[...], w3t_ref[...], b3_ref[...])


# ----------------------------- fused forward kernel --------------------------
def _fused_kernel(x_ref, bconv_ref, cbvec_ref, g_ref, gt_ref, bngv_ref, bnbv_ref,
                  w1t_ref, b1_ref, w2t_ref, b2_ref, w3t_ref, b3_ref,
                  awt_ref, ab_ref, uw_ref,
                  wigo0_ref, bigo0_ref, wigo1_ref, bigo1_ref,
                  w4t_ref, b4_ref, wdec_ref, decb_ref,
                  out_ref, outfin_ref, alpha_ref):
    n = x_ref.shape[0]
    m, rho = alpha_ref.shape

    # ---- encoder ----
    outfin = _encoder_body(
        x_ref[...], bconv_ref[...], cbvec_ref[...], g_ref[...], gt_ref[...],
        bngv_ref[...], bnbv_ref[...], w1t_ref[...], b1_ref[...],
        w2t_ref[...], b2_ref[...], w3t_ref[...], b3_ref[...])
    outfin_ref[...] = outfin

    # ---- ChordLevelAttention over the rho-long sliding windows of outfin ----
    u_all = jnp.tanh(jnp.dot(outfin, awt_ref[...], preferred_element_type=F32) + ab_ref[...])
    sc = jnp.dot(u_all, uw_ref[...], preferred_element_type=F32)          # (N, 1)
    # s[i, r] = sc[i + r]; s is needed verbatim for the alpha output (rho is tiny).
    s = jnp.concatenate([sc[r:r + m, :] for r in range(rho)], axis=1)     # (M, rho)
    smax = jnp.max(s, axis=1, keepdims=True)
    es = jnp.exp(s - smax)
    alpha = es / jnp.sum(es, axis=1, keepdims=True)                       # exact division
    alpha_ref[...] = alpha

    # torch.sum(torch.matmul(alpha, X), 1): every window weighted by alpha's
    # COLUMN sums (faithful to the module's unusual semantics).  Expressed as a
    # single band matmul: attn = Band @ outfin with Band[i, j] = sw[j - i].
    sw = jnp.sum(alpha, axis=0, keepdims=True)                            # (1, rho)
    row = jax.lax.broadcasted_iota(jnp.int32, (m, n), 0)
    col = jax.lax.broadcasted_iota(jnp.int32, (m, n), 1)
    d = col - row
    band = jnp.zeros((m, n), F32)
    for r in range(rho):
        band = band + jnp.where(d == r, sw[:, r:r + 1], 0.0)
    attn = jnp.dot(band, outfin, preferred_element_type=F32)              # (M, E)

    # ---- 2-layer LSTM, seq_len=1, zero initial state (f-gate * c0 == 0) ----
    hcur = attn
    for wigo_ref, bigo_ref in ((wigo0_ref, bigo0_ref), (wigo1_ref, bigo1_ref)):
        gates = jnp.dot(hcur, wigo_ref[...], preferred_element_type=F32) + bigo_ref[...]  # (M, 3H)
        i_g = jax.nn.sigmoid(gates[:, 0:LSTM_H])
        g_g = jnp.tanh(gates[:, LSTM_H:2 * LSTM_H])
        o_g = jax.nn.sigmoid(gates[:, 2 * LSTM_H:3 * LSTM_H])
        hcur = o_g * jnp.tanh(i_g * g_g)

    # ---- linear4 + (tied decoder + ConvTranspose1d) collapsed into one matmul ----
    out4 = jnp.dot(hcur, w4t_ref[...], preferred_element_type=F32) + b4_ref[...]   # (M, E)
    pre = jnp.dot(out4, wdec_ref[...], preferred_element_type=F32) + decb_ref[...] # (M, L)
    out_ref[...] = jax.nn.sigmoid(pre)                                    # lane-dense (M, L)


# ------------------------------- forward wrapper ------------------------------
def embed_classic_net_forward(x, rho, kp):
    """x: (N, 1, 128) float32; kp: kernel-ready params from prepare_kernel_params."""
    n = x.shape[0]
    x2d = x.reshape(n, L)                       # lane/sublane-dense kernel input
    enc_ins = (x2d, kp['bconv'], kp['conv_b_vec'], kp['g'], kp['g_t'],
               kp['bn_gamma_v'], kp['bn_beta_v'],
               kp['w1_t'], kp['b1'], kp['w2_t'], kp['b2'], kp['w3_t'], kp['b3'])

    if rho <= 0:
        # Static specialization: encoder-only kernel, no dead attention/LSTM/decoder tail.
        outfin = pl.pallas_call(
            _encoder_kernel,
            out_shape=jax.ShapeDtypeStruct((n, DIM_EMBED), F32),
            in_specs=[_VMEM_SPEC] * len(enc_ins),
            out_specs=_VMEM_SPEC,
        )(*enc_ins)
        return outfin                           # rho <= 0: module returns only the embedding

    m = n - rho + 1
    ins = enc_ins + (kp['attn_w_t'], kp['attn_b'], kp['u_w'],
                     kp['w_igo0'], kp['b_igo0'], kp['w_igo1'], kp['b_igo1'],
                     kp['w4_t'], kp['b4'], kp['wdec'], kp['dec_b'])
    out2d, outfin, alpha = pl.pallas_call(
        _fused_kernel,
        out_shape=(jax.ShapeDtypeStruct((m, L), F32),
                   jax.ShapeDtypeStruct((n, DIM_EMBED), F32),
                   jax.ShapeDtypeStruct((m, rho), F32)),
        in_specs=[_VMEM_SPEC] * len(ins),
        out_specs=(_VMEM_SPEC, _VMEM_SPEC, _VMEM_SPEC),
    )(*ins)
    return out2d.reshape(m, 1, L), outfin, alpha


# ---------------------- one-time host-side parameter prep ---------------------
def prepare_kernel_params(p):
    """Build band/collapsed matrices (padding folded in), pre-transposed weights,
    per-gate LSTM blocks and the rank-NF BN projection factors. Done once, host-side."""
    kp = {}

    # Conv1d(1->NF, K=12, pad=6), keep first 128 outputs, as x(N,L) @ bconv(L, NF*L):
    #   bconv[i, c*L + t] = conv_w[c, 0, k]  where  i = t + k - PAD (out-of-range => 0)
    cw = p['conv_w'][:, 0, :]                                             # (NF, K)
    i_idx = np.arange(L)[:, None, None]
    k_idx = np.arange(KER)[None, :, None]
    t_idx = np.arange(L)[None, None, :]
    conv_oh = (i_idx == t_idx + k_idx - PAD).astype(np.float32)           # (L, K, L)
    kp['bconv'] = jnp.einsum('ck,ikt->ict', cw, conv_oh).reshape(L, N_FILTERS * L)
    kp['conv_b_vec'] = jnp.repeat(p['conv_b'], L)[None, :]                # (1, NF*L) channel-major

    # Rank-NF per-channel reduce/broadcast factors (replaces the old 512x512 pmat).
    g = np.kron(np.eye(N_FILTERS, dtype=np.float32), np.ones((L, 1), np.float32))  # (NF*L, NF)
    kp['g'] = jnp.asarray(g)                                              # (NF*L, NF)
    kp['g_t'] = jnp.asarray(g.T)                                          # (NF, NF*L)
    kp['bn_gamma_v'] = jnp.repeat(p['bn_gamma'], L)[None, :]
    kp['bn_beta_v'] = jnp.repeat(p['bn_beta'], L)[None, :]

    # Dense encoder weights, pre-transposed (kernel never transposes).
    # TODO(synk): optional bf16 cast of bconv / w1_t for v6e/v7x kept disabled for
    #             f32 1e-3 parity with the pure-f32 reference.
    kp['w1_t'] = p['w1'].T; kp['b1'] = p['b1'][None, :]
    kp['w2_t'] = p['w2'].T; kp['b2'] = p['b2'][None, :]
    kp['w3_t'] = p['w3'].T; kp['b3'] = p['b3'][None, :]

    # Attention
    kp['attn_w_t'] = p['attn_w'].T
    kp['attn_b'] = p['attn_b'][None, :]
    kp['u_w'] = p['u_w'][:, None]

    # LSTM (seq_len=1, zero state): keep only i, g, o gate blocks, transposed; biases summed.
    def lstm_prep(wih, b_ih, b_hh):
        b = b_ih + b_hh
        hd = LSTM_H
        w_igo = jnp.concatenate([wih[0:hd].T, wih[2 * hd:3 * hd].T, wih[3 * hd:4 * hd].T], axis=1)
        b_igo = jnp.concatenate([b[0:hd], b[2 * hd:3 * hd], b[3 * hd:4 * hd]])[None, :]
        return w_igo, b_igo
    kp['w_igo0'], kp['b_igo0'] = lstm_prep(p['wih0'], p['b_ih0'], p['b_hh0'])
    kp['w_igo1'], kp['b_igo1'] = lstm_prep(p['wih1'], p['b_ih1'], p['b_hh1'])
    kp['w4_t'] = p['w4'].T; kp['b4'] = p['b4'][None, :]

    # Tied decoder + ConvTranspose1d(NF->1, K=12, pad=5)[:, :, :-1], collapsed host-side.
    #   bdec[c*L + j, o] = deconv_w[c, 0, o - j + DEC_PAD] (tap out of range => 0)
    #   wdec = w3 @ w2 @ w1 @ bdec   -> single (DIM_EMBED, L) matrix
    dw = p['deconv_w'][:, 0, :]                                           # (NF, K)
    j_idx = np.arange(L)[:, None, None]
    o_idx = np.arange(L)[None, :, None]
    kk = np.arange(KER)[None, None, :]
    dec_oh = (kk == (o_idx - j_idx + DEC_PAD)).astype(np.float32)         # (L, L, K)
    bdec = jnp.einsum('ck,jok->cjo', dw, dec_oh).reshape(N_FILTERS * L, L)
    kp['wdec'] = p['w3'] @ p['w2'] @ p['w1'] @ bdec                       # (E, L)
    kp['dec_b'] = p['deconv_b'].reshape(1, 1)
    return kp


# ---------------------------- parameter creation ------------------------------
def init_params(key):
    ks = jax.random.split(key, 24)

    def u(k, shape, scale=0.1):
        return jax.random.uniform(k, shape, F32, -scale, scale)

    p = {}
    p['conv_w'] = u(ks[0], (N_FILTERS, 1, KER))
    p['conv_b'] = u(ks[1], (N_FILTERS,))
    p['bn_gamma'] = jnp.ones((N_FILTERS,), F32)       # torch BatchNorm1d default init
    p['bn_beta'] = jnp.zeros((N_FILTERS,), F32)
    p['w1'] = u(ks[2], (FH0, N_FILTERS * L))
    p['b1'] = u(ks[3], (FH0,))
    p['w2'] = u(ks[4], (FH1, FH0))
    p['b2'] = u(ks[5], (FH1,))
    p['w3'] = u(ks[6], (DIM_EMBED, FH1))
    p['b3'] = u(ks[7], (DIM_EMBED,))
    p['attn_w'] = u(ks[8], (DIM_EMBED, DIM_EMBED))
    p['attn_b'] = u(ks[9], (DIM_EMBED,))
    p['u_w'] = jax.random.uniform(ks[10], (DIM_EMBED,), F32, 0.0, 1.0)   # torch.rand
    # LSTM layers.  W_hh omitted: with seq_len=1 and zero initial state it contributes nothing.
    p['wih0'] = u(ks[11], (4 * LSTM_H, DIM_EMBED))
    p['b_ih0'] = u(ks[12], (4 * LSTM_H,))
    p['b_hh0'] = u(ks[13], (4 * LSTM_H,))
    p['wih1'] = u(ks[14], (4 * LSTM_H, LSTM_H))
    p['b_ih1'] = u(ks[15], (4 * LSTM_H,))
    p['b_hh1'] = u(ks[16], (4 * LSTM_H,))
    p['w4'] = u(ks[17], (DIM_EMBED, LSTM_H))
    p['b4'] = u(ks[18], (DIM_EMBED,))
    p['deconv_w'] = u(ks[19], (N_FILTERS, 1, KER))
    p['deconv_b'] = u(ks[20], (1,))
    return p


# ------------------------------ pure-JAX reference ----------------------------
def reference_forward(x, rho, p):
    n = x.shape[0]
    xp = jnp.pad(x[:, 0, :], ((0, 0), (PAD, PAD)))
    cw = p['conv_w'][:, 0, :]
    conv = jnp.stack(
        [sum(xp[:, k:k + L] * cw[c, k] for k in range(KER)) + p['conv_b'][c]
         for c in range(N_FILTERS)], axis=1)                             # conv1(x)[:, :, :-1]
    mu = jnp.mean(conv, axis=(0, 2), keepdims=True)
    var = jnp.mean((conv - mu) ** 2, axis=(0, 2), keepdims=True)
    h = jnp.maximum((conv - mu) / jnp.sqrt(var + BN_EPS)
                    * p['bn_gamma'][None, :, None] + p['bn_beta'][None, :, None], 0.0)
    flat = h.reshape(n, N_FILTERS * L)
    h1 = jnp.maximum(flat @ p['w1'].T + p['b1'], 0.0)
    h2 = jnp.maximum(h1 @ p['w2'].T + p['b2'], 0.0)
    outfin = h2 @ p['w3'].T + p['b3']
    m = n - rho + 1
    dec = jnp.stack([outfin[i:i + rho] for i in range(m)], axis=0)       # (M, rho, E)
    u_it = jnp.tanh(dec @ p['attn_w'].T + p['attn_b'])
    s = jnp.einsum('mre,e->mr', u_it, p['u_w'])
    alpha = jax.nn.softmax(s, axis=1)
    attn_out = jnp.einsum('r,mre->me', jnp.sum(alpha, axis=0), dec)
    hcur = attn_out
    for wih, b in ((p['wih0'], p['b_ih0'] + p['b_hh0']),
                   (p['wih1'], p['b_ih1'] + p['b_hh1'])):
        gates = hcur @ wih.T + b
        i_g = jax.nn.sigmoid(gates[:, :LSTM_H])
        g_g = jnp.tanh(gates[:, 2 * LSTM_H:3 * LSTM_H])
        o_g = jax.nn.sigmoid(gates[:, 3 * LSTM_H:])
        hcur = o_g * jnp.tanh(i_g * g_g)            # c0 = 0 -> f-gate term vanishes
    out4 = hcur @ p['w4'].T + p['b4']
    y3 = (((out4 @ p['w3']) @ p['w2']) @ p['w1']).reshape(m, N_FILTERS, L)
    ypad = jnp.pad(y3, ((0, 0), (0, 0), (DPAD, DPAD)))
    wflip = p['deconv_w'][:, 0, ::-1]
    acc = sum(ypad[:, c, k:k + L] * wflip[c, k]
              for c in range(N_FILTERS) for k in range(KER))
    out = jax.nn.sigmoid(acc + p['deconv_b'][0])[:, None, :]
    return out, outfin, alpha


# ------------------------------------ main ------------------------------------
if __name__ == "__main__":
    key = jax.random.PRNGKey(0)
    pkey, xkey = jax.random.split(key)
    params = init_params(pkey)
    kparams = prepare_kernel_params(params)        # one-time host-side weight prep

    N = 8
    rho = 4
    # batch of 128-dimensional piano-roll vectors, shape (N, 1, 128)
    x = (jax.random.uniform(xkey, (N, 1, L), F32) > 0.7).astype(F32)

    out, outfin, alpha = embed_classic_net_forward(x, rho, kparams)
    jax.block_until_ready((out, outfin, alpha))

    ref_out, ref_fin, ref_alpha = reference_forward(x, rho, params)
    assert out.shape == (N - rho + 1, 1, L)
    assert outfin.shape == (N, DIM_EMBED)
    assert alpha.shape == (N - rho + 1, rho)
    # TODO(synk): the original code views (n-rho+1)*nF*128 values as (n-rho, nF, 128),
    # a shape bug in the PyTorch module; we keep all n-rho+1 windows.
    assert bool(jnp.allclose(outfin, ref_fin, atol=1e-3, rtol=1e-3))
    assert bool(jnp.allclose(alpha, ref_alpha, atol=1e-3, rtol=1e-3))
    assert bool(jnp.allclose(out, ref_out, atol=1e-3, rtol=1e-3))

    # Encoder-only (rho <= 0) specialized kernel
    fin_only = embed_classic_net_forward(x, 0, kparams)
    jax.block_until_ready(fin_only)
    assert fin_only.shape == (N, DIM_EMBED)
    assert bool(jnp.allclose(fin_only, ref_fin, atol=1e-3, rtol=1e-3))

    print("KERNEL_OK")
</pallas_src>

<mosaic_0001>
module attributes {stable_mosaic.version = 11 : i64} {
  func.func @_fused_kernel(%arg0: memref<8x128xf32, #tpu.memory_space<vmem>>, %arg1: memref<128x512xf32, #tpu.memory_space<vmem>>, %arg2: memref<1x512xf32, #tpu.memory_space<vmem>>, %arg3: memref<512x4xf32, #tpu.memory_space<vmem>>, %arg4: memref<4x512xf32, #tpu.memory_space<vmem>>, %arg5: memref<1x512xf32, #tpu.memory_space<vmem>>, %arg6: memref<1x512xf32, #tpu.memory_space<vmem>>, %arg7: memref<512x32xf32, #tpu.memory_space<vmem>>, %arg8: memref<1x32xf32, #tpu.memory_space<vmem>>, %arg9: memref<32x16xf32, #tpu.memory_space<vmem>>, %arg10: memref<1x16xf32, #tpu.memory_space<vmem>>, %arg11: memref<16x8xf32, #tpu.memory_space<vmem>>, %arg12: memref<1x8xf32, #tpu.memory_space<vmem>>, %arg13: memref<8x8xf32, #tpu.memory_space<vmem>>, %arg14: memref<1x8xf32, #tpu.memory_space<vmem>>, %arg15: memref<8x1xf32, #tpu.memory_space<vmem>>, %arg16: memref<8x48xf32, #tpu.memory_space<vmem>>, %arg17: memref<1x48xf32, #tpu.memory_space<vmem>>, %arg18: memref<16x48xf32, #tpu.memory_space<vmem>>, %arg19: memref<1x48xf32, #tpu.memory_space<vmem>>, %arg20: memref<16x8xf32, #tpu.memory_space<vmem>>, %arg21: memref<1x8xf32, #tpu.memory_space<vmem>>, %arg22: memref<8x128xf32, #tpu.memory_space<vmem>>, %arg23: memref<1x1xf32, #tpu.memory_space<vmem>>, %arg24: memref<5x128xf32, #tpu.memory_space<vmem>>, %arg25: memref<8x8xf32, #tpu.memory_space<vmem>>, %arg26: memref<5x4xf32, #tpu.memory_space<vmem>>) attributes {dimension_semantics = [], scalar_prefetch = 0 : i64, scratch_operands = 0 : i64, tpu.core_type = #tpu.core_type<tc>} {
    %c0 = arith.constant 0 : index
    %c0_0 = arith.constant 0 : index
    %0 = vector.load %arg0[%c0, %c0_0] : memref<8x128xf32, #tpu.memory_space<vmem>>, vector<8x128xf32>
    %c0_1 = arith.constant 0 : index
    %c0_2 = arith.constant 0 : index
    %1 = vector.load %arg1[%c0_1, %c0_2] : memref<128x512xf32, #tpu.memory_space<vmem>>, vector<128x512xf32>
    %c0_3 = arith.constant 0 : index
    %c0_4 = arith.constant 0 : index
    %2 = vector.load %arg2[%c0_3, %c0_4] : memref<1x512xf32, #tpu.memory_space<vmem>>, vector<1x512xf32>
    %c0_5 = arith.constant 0 : index
    %c0_6 = arith.constant 0 : index
    %3 = vector.load %arg3[%c0_5, %c0_6] : memref<512x4xf32, #tpu.memory_space<vmem>>, vector<512x4xf32>
    %c0_7 = arith.constant 0 : index
    %c0_8 = arith.constant 0 : index
    %4 = vector.load %arg4[%c0_7, %c0_8] : memref<4x512xf32, #tpu.memory_space<vmem>>, vector<4x512xf32>
    %c0_9 = arith.constant 0 : index
    %c0_10 = arith.constant 0 : index
    %5 = vector.load %arg5[%c0_9, %c0_10] : memref<1x512xf32, #tpu.memory_space<vmem>>, vector<1x512xf32>
    %c0_11 = arith.constant 0 : index
    %c0_12 = arith.constant 0 : index
    %6 = vector.load %arg6[%c0_11, %c0_12] : memref<1x512xf32, #tpu.memory_space<vmem>>, vector<1x512xf32>
    %c0_13 = arith.constant 0 : index
    %c0_14 = arith.constant 0 : index
    %7 = vector.load %arg7[%c0_13, %c0_14] : memref<512x32xf32, #tpu.memory_space<vmem>>, vector<512x32xf32>
    %c0_15 = arith.constant 0 : index
    %c0_16 = arith.constant 0 : index
    %8 = vector.load %arg8[%c0_15, %c0_16] : memref<1x32xf32, #tpu.memory_space<vmem>>, vector<1x32xf32>
    %c0_17 = arith.constant 0 : index
    %c0_18 = arith.constant 0 : index
    %9 = vector.load %arg9[%c0_17, %c0_18] : memref<32x16xf32, #tpu.memory_space<vmem>>, vector<32x16xf32>
    %c0_19 = arith.constant 0 : index
    %c0_20 = arith.constant 0 : index
    %10 = vector.load %arg10[%c0_19, %c0_20] : memref<1x16xf32, #tpu.memory_space<vmem>>, vector<1x16xf32>
    %c0_21 = arith.constant 0 : index
    %c0_22 = arith.constant 0 : index
    %11 = vector.load %arg11[%c0_21, %c0_22] : memref<16x8xf32, #tpu.memory_space<vmem>>, vector<16x8xf32>
    %c0_23 = arith.constant 0 : index
    %c0_24 = arith.constant 0 : index
    %12 = vector.load %arg12[%c0_23, %c0_24] : memref<1x8xf32, #tpu.memory_space<vmem>>, vector<1x8xf32>
    %cst = arith.constant dense<0.000000e+00> : vector<8x512xf32>
    %13 = tpu.matmul %0, %1, %cst {dimension_numbers = #tpu.dot_dimension_numbers<[1], [0], [0], [1], [0, 0, 1, 1], [], []>} : vector<8x128xf32>, vector<128x512xf32>, vector<8x512xf32> -> vector<8x512xf32>
    %14 = vector.broadcast %2 : vector<1x512xf32> to vector<8x512xf32>
    %15 = arith.addf %13, %14 : vector<8x512xf32>
    %cst_25 = arith.constant dense<0.000000e+00> : vector<512xf32>
    %16 = vector.multi_reduction <add>, %15, %cst_25 [0] : vector<8x512xf32> to vector<512xf32>
    %17 = vector.shape_cast %16 : vector<512xf32> to vector<1x512xf32>
    %18 = arith.mulf %15, %15 : vector<8x512xf32>
    %cst_26 = arith.constant dense<0.000000e+00> : vector<512xf32>
    %19 = vector.multi_reduction <add>, %18, %cst_26 [0] : vector<8x512xf32> to vector<512xf32>
    %20 = vector.shape_cast %19 : vector<512xf32> to vector<1x512xf32>
    %cst_27 = arith.constant dense<0.000000e+00> : vector<1x4xf32>
    %21 = tpu.matmul %17, %3, %cst_27 {dimension_numbers = #tpu.dot_dimension_numbers<[1], [0], [0], [1], [0, 0, 1, 1], [], []>} : vector<1x512xf32>, vector<512x4xf32>, vector<1x4xf32> -> vector<1x4xf32>
    %cst_28 = arith.constant 9.765625E-4 : f32
    %22 = vector.broadcast %cst_28 : f32 to vector<1x4xf32>
    %23 = arith.mulf %21, %22 : vector<1x4xf32>
    %cst_29 = arith.constant dense<0.000000e+00> : vector<1x4xf32>
    %24 = tpu.matmul %20, %3, %cst_29 {dimension_numbers = #tpu.dot_dimension_numbers<[1], [0], [0], [1], [0, 0, 1, 1], [], []>} : vector<1x512xf32>, vector<512x4xf32>, vector<1x4xf32> -> vector<1x4xf32>
    %cst_30 = arith.constant 9.765625E-4 : f32
    %25 = vector.broadcast %cst_30 : f32 to vector<1x4xf32>
    %26 = arith.mulf %24, %25 : vector<1x4xf32>
    %cst_31 = arith.constant dense<0.000000e+00> : vector<1x512xf32>
    %27 = tpu.matmul %23, %4, %cst_31 {dimension_numbers = #tpu.dot_dimension_numbers<[1], [0], [0], [1], [0, 0, 1, 1], [], []>} : vector<1x4xf32>, vector<4x512xf32>, vector<1x512xf32> -> vector<1x512xf32>
    %cst_32 = arith.constant dense<0.000000e+00> : vector<1x512xf32>
    %28 = tpu.matmul %26, %4, %cst_32 {dimension_numbers = #tpu.dot_dimension_numbers<[1], [0], [0], [1], [0, 0, 1, 1], [], []>} : vector<1x4xf32>, vector<4x512xf32>, vector<1x512xf32> -> vector<1x512xf32>
    %29 = arith.mulf %27, %27 : vector<1x512xf32>
    %30 = arith.subf %28, %29 : vector<1x512xf32>
    %cst_33 = arith.constant 9.99999974E-6 : f32
    %31 = vector.broadcast %cst_33 : f32 to vector<1x512xf32>
    %32 = arith.addf %30, %31 : vector<1x512xf32>
    %33 = math.rsqrt %32 : vector<1x512xf32>
    %34 = arith.mulf %5, %33 : vector<1x512xf32>
    %35 = arith.mulf %27, %34 : vector<1x512xf32>
    %36 = arith.subf %6, %35 : vector<1x512xf32>
    %37 = vector.broadcast %34 : vector<1x512xf32> to vector<8x512xf32>
    %38 = arith.mulf %15, %37 : vector<8x512xf32>
    %39 = vector.broadcast %36 : vector<1x512xf32> to vector<8x512xf32>
    %40 = arith.addf %38, %39 : vector<8x512xf32>
    %cst_34 = arith.constant 0.000000e+00 : f32
    %41 = vector.broadcast %cst_34 : f32 to vector<8x512xf32>
    %42 = arith.maximumf %40, %41 : vector<8x512xf32>
    %cst_35 = arith.constant dense<0.000000e+00> : vector<8x32xf32>
    %43 = tpu.matmul %42, %7, %cst_35 {dimension_numbers = #tpu.dot_dimension_numbers<[1], [0], [0], [1], [0, 0, 1, 1], [], []>} : vector<8x512xf32>, vector<512x32xf32>, vector<8x32xf32> -> vector<8x32xf32>
    %44 = vector.broadcast %8 : vector<1x32xf32> to vector<8x32xf32>
    %45 = arith.addf %43, %44 : vector<8x32xf32>
    %cst_36 = arith.constant 0.000000e+00 : f32
    %46 = vector.broadcast %cst_36 : f32 to vector<8x32xf32>
    %47 = arith.maximumf %45, %46 : vector<8x32xf32>
    %cst_37 = arith.constant dense<0.000000e+00> : vector<8x16xf32>
    %48 = tpu.matmul %47, %9, %cst_37 {dimension_numbers = #tpu.dot_dimension_numbers<[1], [0], [0], [1], [0, 0, 1, 1], [], []>} : vector<8x32xf32>, vector<32x16xf32>, vector<8x16xf32> -> vector<8x16xf32>
    %49 = vector.broadcast %10 : vector<1x16xf32> to vector<8x16xf32>
    %50 = arith.addf %48, %49 : vector<8x16xf32>
    %cst_38 = arith.constant 0.000000e+00 : f32
    %51 = vector.broadcast %cst_38 : f32 to vector<8x16xf32>
    %52 = arith.maximumf %50, %51 : vector<8x16xf32>
    %cst_39 = arith.constant dense<0.000000e+00> : vector<8x8xf32>
    %53 = tpu.matmul %52, %11, %cst_39 {dimension_numbers = #tpu.dot_dimension_numbers<[1], [0], [0], [1], [0, 0, 1, 1], [], []>} : vector<8x16xf32>, vector<16x8xf32>, vector<8x8xf32> -> vector<8x8xf32>
    %54 = vector.broadcast %12 : vector<1x8xf32> to vector<8x8xf32>
    %55 = arith.addf %53, %54 : vector<8x8xf32>
    %c0_40 = arith.constant 0 : index
    %c0_41 = arith.constant 0 : index
    %56 = vector.load %arg25[%c0_40, %c0_41] : memref<8x8xf32, #tpu.memory_space<vmem>>, vector<8x8xf32>
    tpu.vector_store %arg25[%c0_40, %c0_41], %55 {strides = array<i32>} : memref<8x8xf32, #tpu.memory_space<vmem>>, vector<8x8xf32>,
    %c0_42 = arith.constant 0 : index
    %c0_43 = arith.constant 0 : index
    %57 = vector.load %arg13[%c0_42, %c0_43] : memref<8x8xf32, #tpu.memory_space<vmem>>, vector<8x8xf32>
    %cst_44 = arith.constant dense<0.000000e+00> : vector<8x8xf32>
    %58 = tpu.matmul %55, %57, %cst_44 {dimension_numbers = #tpu.dot_dimension_numbers<[1], [0], [0], [1], [0, 0, 1, 1], [], []>} : vector<8x8xf32>, vector<8x8xf32>, vector<8x8xf32> -> vector<8x8xf32>
    %c0_45 = arith.constant 0 : index
    %c0_46 = arith.constant 0 : index
    %59 = vector.load %arg14[%c0_45, %c0_46] : memref<1x8xf32, #tpu.memory_space<vmem>>, vector<1x8xf32>
    %60 = vector.broadcast %59 : vector<1x8xf32> to vector<8x8xf32>
    %61 = arith.addf %58, %60 : vector<8x8xf32>
    %62 = math.tanh %61 : vector<8x8xf32>
    %c0_47 = arith.constant 0 : index
    %c0_48 = arith.constant 0 : index
    %63 = vector.load %arg15[%c0_47, %c0_48] : memref<8x1xf32, #tpu.memory_space<vmem>>, vector<8x1xf32>
    %cst_49 = arith.constant dense<0.000000e+00> : vector<8x1xf32>
    %64 = tpu.matmul %62, %63, %cst_49 {dimension_numbers = #tpu.dot_dimension_numbers<[1], [0], [0], [1], [0, 0, 1, 1], [], []>} : vector<8x8xf32>, vector<8x1xf32>, vector<8x1xf32> -> vector<8x1xf32>
    %65 = vector.extract_strided_slice %64 {offsets = [0, 0], sizes = [5, 1], strides = [1, 1]} : vector<8x1xf32> to vector<5x1xf32>
    %66 = vector.extract_strided_slice %64 {offsets = [1, 0], sizes = [5, 1], strides = [1, 1]} : vector<8x1xf32> to vector<5x1xf32>
    %67 = vector.extract_strided_slice %64 {offsets = [2, 0], sizes = [5, 1], strides = [1, 1]} : vector<8x1xf32> to vector<5x1xf32>
    %68 = vector.extract_strided_slice %64 {offsets = [3, 0], sizes = [5, 1], strides = [1, 1]} : vector<8x1xf32> to vector<5x1xf32>
    %69 = tpu.concatenate %65, %66, %67, %68 in 1 : vector<5x1xf32>, vector<5x1xf32>, vector<5x1xf32>, vector<5x1xf32> -> vector<5x4xf32>
    %cst_50 = arith.constant dense<0xFF800000> : vector<5xf32>
    %70 = vector.multi_reduction <maximumf>, %69, %cst_50 [1] : vector<5x4xf32> to vector<5xf32>
    %71 = vector.shape_cast %70 : vector<5xf32> to vector<5x1xf32>
    %72 = vector.broadcast %71 : vector<5x1xf32> to vector<5x4xf32>
    %73 = arith.subf %69, %72 : vector<5x4xf32>
    %74 = math.exp %73 : vector<5x4xf32>
    %cst_51 = arith.constant dense<0.000000e+00> : vector<5xf32>
    %75 = vector.multi_reduction <add>, %74, %cst_51 [1] : vector<5x4xf32> to vector<5xf32>
    %76 = vector.shape_cast %75 : vector<5xf32> to vector<5x1xf32>
    %77 = vector.broadcast %76 : vector<5x1xf32> to vector<5x4xf32>
    %78 = arith.divf %74, %77 : vector<5x4xf32>
    %c0_52 = arith.constant 0 : index
    %c0_53 = arith.constant 0 : index
    %79 = vector.load %arg26[%c0_52, %c0_53] : memref<5x4xf32, #tpu.memory_space<vmem>>, vector<5x4xf32>
    tpu.vector_store %arg26[%c0_52, %c0_53], %78 {strides = array<i32>} : memref<5x4xf32, #tpu.memory_space<vmem>>, vector<5x4xf32>,
    %cst_54 = arith.constant dense<0.000000e+00> : vector<4xf32>
    %80 = vector.multi_reduction <add>, %78, %cst_54 [0] : vector<5x4xf32> to vector<4xf32>
    %81 = vector.shape_cast %80 : vector<4xf32> to vector<1x4xf32>
    %82 = tpu.iota {dimensions = array<i32: 0>} : vector<5x8xi32>
    %83 = tpu.iota {dimensions = array<i32: 1>} : vector<5x8xi32>
    %84 = arith.subi %83, %82 : vector<5x8xi32>
    %cst_55 = arith.constant 0.000000e+00 : f32
    %85 = vector.broadcast %cst_55 : f32 to vector<5x8xf32>
    %c0_i32 = arith.constant 0 : i32
    %86 = vector.broadcast %c0_i32 : i32 to vector<5x8xi32>
    %87 = arith.cmpi eq, %84, %86 : vector<5x8xi32>
    %88 = vector.extract_strided_slice %81 {offsets = [0, 0], sizes = [1, 1], strides = [1, 1]} : vector<1x4xf32> to vector<1x1xf32>
    %cst_56 = arith.constant 0.000000e+00 : f32
    %89 = vector.shape_cast %88 : vector<1x1xf32> to vector<1x1xf32>
    %90 = vector.broadcast %89 : vector<1x1xf32> to vector<5x8xf32>
    %91 = vector.broadcast %cst_56 : f32 to vector<5x8xf32>
    %92 = arith.select %87, %90, %91 : vector<5x8xi1>, vector<5x8xf32>
    %93 = arith.addf %85, %92 : vector<5x8xf32>
    %c1_i32 = arith.constant 1 : i32
    %94 = vector.broadcast %c1_i32 : i32 to vector<5x8xi32>
    %95 = arith.cmpi eq, %84, %94 : vector<5x8xi32>
    %96 = vector.extract_strided_slice %81 {offsets = [0, 1], sizes = [1, 1], strides = [1, 1]} : vector<1x4xf32> to vector<1x1xf32>
    %cst_57 = arith.constant 0.000000e+00 : f32
    %97 = vector.shape_cast %96 : vector<1x1xf32> to vector<1x1xf32>
    %98 = vector.broadcast %97 : vector<1x1xf32> to vector<5x8xf32>
    %99 = vector.broadcast %cst_57 : f32 to vector<5x8xf32>
    %100 = arith.select %95, %98, %99 : vector<5x8xi1>, vector<5x8xf32>
    %101 = arith.addf %93, %100 : vector<5x8xf32>
    %c2_i32 = arith.constant 2 : i32
    %102 = vector.broadcast %c2_i32 : i32 to vector<5x8xi32>
    %103 = arith.cmpi eq, %84, %102 : vector<5x8xi32>
    %104 = vector.extract_strided_slice %81 {offsets = [0, 2], sizes = [1, 1], strides = [1, 1]} : vector<1x4xf32> to vector<1x1xf32>
    %cst_58 = arith.constant 0.000000e+00 : f32
    %105 = vector.shape_cast %104 : vector<1x1xf32> to vector<1x1xf32>
    %106 = vector.broadcast %105 : vector<1x1xf32> to vector<5x8xf32>
    %107 = vector.broadcast %cst_58 : f32 to vector<5x8xf32>
    %108 = arith.select %103, %106, %107 : vector<5x8xi1>, vector<5x8xf32>
    %109 = arith.addf %101, %108 : vector<5x8xf32>
    %c3_i32 = arith.constant 3 : i32
    %110 = vector.broadcast %c3_i32 : i32 to vector<5x8xi32>
    %111 = arith.cmpi eq, %84, %110 : vector<5x8xi32>
    %112 = vector.extract_strided_slice %81 {offsets = [0, 3], sizes = [1, 1], strides = [1, 1]} : vector<1x4xf32> to vector<1x1xf32>
    %cst_59 = arith.constant 0.000000e+00 : f32
    %113 = vector.shape_cast %112 : vector<1x1xf32> to vector<1x1xf32>
    %114 = vector.broadcast %113 : vector<1x1xf32> to vector<5x8xf32>
    %115 = vector.broadcast %cst_59 : f32 to vector<5x8xf32>
    %116 = arith.select %111, %114, %115 : vector<5x8xi1>, vector<5x8xf32>
    %117 = arith.addf %109, %116 : vector<5x8xf32>
    %cst_60 = arith.constant dense<0.000000e+00> : vector<5x8xf32>
    %118 = tpu.matmul %117, %55, %cst_60 {dimension_numbers = #tpu.dot_dimension_numbers<[1], [0], [0], [1], [0, 0, 1, 1], [], []>} : vector<5x8xf32>, vector<8x8xf32>, vector<5x8xf32> -> vector<5x8xf32>
    %c0_61 = arith.constant 0 : index
    %c0_62 = arith.constant 0 : index
    %119 = vector.load %arg16[%c0_61, %c0_62] : memref<8x48xf32, #tpu.memory_space<vmem>>, vector<8x48xf32>
    %cst_63 = arith.constant dense<0.000000e+00> : vector<5x48xf32>
    %120 = tpu.matmul %118, %119, %cst_63 {dimension_numbers = #tpu.dot_dimension_numbers<[1], [0], [0], [1], [0, 0, 1, 1], [], []>} : vector<5x8xf32>, vector<8x48xf32>, vector<5x48xf32> -> vector<5x48xf32>
    %c0_64 = arith.constant 0 : index
    %c0_65 = arith.constant 0 : index
    %121 = vector.load %arg17[%c0_64, %c0_65] : memref<1x48xf32, #tpu.memory_space<vmem>>, vector<1x48xf32>
    %122 = vector.broadcast %121 : vector<1x48xf32> to vector<5x48xf32>
    %123 = arith.addf %120, %122 : vector<5x48xf32>
    %124 = vector.extract_strided_slice %123 {offsets = [0, 0], sizes = [5, 16], strides = [1, 1]} : vector<5x48xf32> to vector<5x16xf32>
    %125 = arith.negf %124 : vector<5x16xf32>
    %126 = math.exp %125 : vector<5x16xf32>
    %cst_66 = arith.constant 1.000000e+00 : f32
    %127 = vector.broadcast %cst_66 : f32 to vector<5x16xf32>
    %128 = arith.addf %127, %126 : vector<5x16xf32>
    %129 = arith.divf %127, %128 : vector<5x16xf32>
    %130 = vector.extract_strided_slice %123 {offsets = [0, 16], sizes = [5, 16], strides = [1, 1]} : vector<5x48xf32> to vector<5x16xf32>
    %131 = math.tanh %130 : vector<5x16xf32>
    %132 = vector.extract_strided_slice %123 {offsets = [0, 32], sizes = [5, 16], strides = [1, 1]} : vector<5x48xf32> to vector<5x16xf32>
    %133 = arith.negf %132 : vector<5x16xf32>
    %134 = math.exp %133 : vector<5x16xf32>
    %cst_67 = arith.constant 1.000000e+00 : f32
    %135 = vector.broadcast %cst_67 : f32 to vector<5x16xf32>
    %136 = arith.addf %135, %134 : vector<5x16xf32>
    %137 = arith.divf %135, %136 : vector<5x16xf32>
    %138 = arith.mulf %129, %131 : vector<5x16xf32>
    %139 = math.tanh %138 : vector<5x16xf32>
    %140 = arith.mulf %137, %139 : vector<5x16xf32>
    %c0_68 = arith.constant 0 : index
    %c0_69 = arith.constant 0 : index
    %141 = vector.load %arg18[%c0_68, %c0_69] : memref<16x48xf32, #tpu.memory_space<vmem>>, vector<16x48xf32>
    %cst_70 = arith.constant dense<0.000000e+00> : vector<5x48xf32>
    %142 = tpu.matmul %140, %141, %cst_70 {dimension_numbers = #tpu.dot_dimension_numbers<[1], [0], [0], [1], [0, 0, 1, 1], [], []>} : vector<5x16xf32>, vector<16x48xf32>, vector<5x48xf32> -> vector<5x48xf32>
    %c0_71 = arith.constant 0 : index
    %c0_72 = arith.constant 0 : index
    %143 = vector.load %arg19[%c0_71, %c0_72] : memref<1x48xf32, #tpu.memory_space<vmem>>, vector<1x48xf32>
    %144 = vector.broadcast %143 : vector<1x48xf32> to vector<5x48xf32>
    %145 = arith.addf %142, %144 : vector<5x48xf32>
    %146 = vector.extract_strided_slice %145 {offsets = [0, 0], sizes = [5, 16], strides = [1, 1]} : vector<5x48xf32> to vector<5x16xf32>
    %147 = arith.negf %146 : vector<5x16xf32>
    %148 = math.exp %147 : vector<5x16xf32>
    %cst_73 = arith.constant 1.000000e+00 : f32
    %149 = vector.broadcast %cst_73 : f32 to vector<5x16xf32>
    %150 = arith.addf %149, %148 : vector<5x16xf32>
    %151 = arith.divf %149, %150 : vector<5x16xf32>
    %152 = vector.extract_strided_slice %145 {offsets = [0, 16], sizes = [5, 16], strides = [1, 1]} : vector<5x48xf32> to vector<5x16xf32>
    %153 = math.tanh %152 : vector<5x16xf32>
    %154 = vector.extract_strided_slice %145 {offsets = [0, 32], sizes = [5, 16], strides = [1, 1]} : vector<5x48xf32> to vector<5x16xf32>
    %155 = arith.negf %154 : vector<5x16xf32>
    %156 = math.exp %155 : vector<5x16xf32>
    %cst_74 = arith.constant 1.000000e+00 : f32
    %157 = vector.broadcast %cst_74 : f32 to vector<5x16xf32>
    %158 = arith.addf %157, %156 : vector<5x16xf32>
    %159 = arith.divf %157, %158 : vector<5x16xf32>
    %160 = arith.mulf %151, %153 : vector<5x16xf32>
    %161 = math.tanh %160 : vector<5x16xf32>
    %162 = arith.mulf %159, %161 : vector<5x16xf32>
    %c0_75 = arith.constant 0 : index
    %c0_76 = arith.constant 0 : index
    %163 = vector.load %arg20[%c0_75, %c0_76] : memref<16x8xf32, #tpu.memory_space<vmem>>, vector<16x8xf32>
    %cst_77 = arith.constant dense<0.000000e+00> : vector<5x8xf32>
    %164 = tpu.matmul %162, %163, %cst_77 {dimension_numbers = #tpu.dot_dimension_numbers<[1], [0], [0], [1], [0, 0, 1, 1], [], []>} : vector<5x16xf32>, vector<16x8xf32>, vector<5x8xf32> -> vector<5x8xf32>
    %c0_78 = arith.constant 0 : index
    %c0_79 = arith.constant 0 : index
    %165 = vector.load %arg21[%c0_78, %c0_79] : memref<1x8xf32, #tpu.memory_space<vmem>>, vector<1x8xf32>
    %166 = vector.broadcast %165 : vector<1x8xf32> to vector<5x8xf32>
    %167 = arith.addf %164, %166 : vector<5x8xf32>
    %c0_80 = arith.constant 0 : index
    %c0_81 = arith.constant 0 : index
    %168 = vector.load %arg22[%c0_80, %c0_81] : memref<8x128xf32, #tpu.memory_space<vmem>>, vector<8x128xf32>
    %cst_82 = arith.constant dense<0.000000e+00> : vector<5x128xf32>
    %169 = tpu.matmul %167, %168, %cst_82 {dimension_numbers = #tpu.dot_dimension_numbers<[1], [0], [0], [1], [0, 0, 1, 1], [], []>} : vector<5x8xf32>, vector<8x128xf32>, vector<5x128xf32> -> vector<5x128xf32>
    %c0_83 = arith.constant 0 : index
    %c0_84 = arith.constant 0 : index
    %170 = vector.load %arg23[%c0_83, %c0_84] : memref<1x1xf32, #tpu.memory_space<vmem>>, vector<1x1xf32>
    %171 = vector.broadcast %170 : vector<1x1xf32> to vector<5x128xf32>
    %172 = arith.addf %169, %171 : vector<5x128xf32>
    %173 = arith.negf %172 : vector<5x128xf32>
    %174 = math.exp %173 : vector<5x128xf32>
    %cst_85 = arith.constant 1.000000e+00 : f32
    %175 = vector.broadcast %cst_85 : f32 to vector<5x128xf32>
    %176 = arith.addf %175, %174 : vector<5x128xf32>
    %177 = arith.divf %175, %176 : vector<5x128xf32>
    %c0_86 = arith.constant 0 : index
    %c0_87 = arith.constant 0 : index
    %178 = vector.load %arg24[%c0_86, %c0_87] : memref<5x128xf32, #tpu.memory_space<vmem>>, vector<5x128xf32>
    tpu.vector_store %arg24[%c0_86, %c0_87], %177 {strides = array<i32>} : memref<5x128xf32, #tpu.memory_space<vmem>>, vector<5x128xf32>,
    return
  }
}

</mosaic_0001>

<llo_original>
// kernel: tpu_custom_call.1
$region0: #{tpu_custom_call.1}
  #allocation0 [shape = 'u32[]', space=smem, size = 0x4, offset = 0x4, fixed_abs, tag = 'smem constant byte address 0x4 - core index']
  #allocation1 [shape = 'u32[144,128]{1,0:T(1,128)}', space=vmem, size = 0x12000, scoped, tag = 'internal scratch']
  #allocation2 [shape = 'f32[1,1]{1,0:T(1,128)S(1)}', space=vmem, size = 0x200, scoped, tag = 'scoped memory for tpu_custom_call.1']
  %s0 = inlined_call_operand.vmem [shape: f32[8,128], index: 0, kind: input, shape index: {}]
  %s1 = inlined_call_operand.vmem [shape: f32[128,512], index: 1, kind: input, shape index: {}]
  %s2 = inlined_call_operand.vmem [shape: f32[1,512], index: 2, kind: input, shape index: {}]
  %s3 = inlined_call_operand.vmem [shape: f32[512,4], index: 3, kind: input, shape index: {}]
  %s4 = inlined_call_operand.vmem [shape: f32[4,512], index: 4, kind: input, shape index: {}]
  %s5 = inlined_call_operand.vmem [shape: f32[1,512], index: 5, kind: input, shape index: {}]
  %s6 = inlined_call_operand.vmem [shape: f32[1,512], index: 6, kind: input, shape index: {}]
  %s7 = inlined_call_operand.vmem [shape: f32[512,32], index: 7, kind: input, shape index: {}]
  %s8 = inlined_call_operand.vmem [shape: f32[1,32], index: 8, kind: input, shape index: {}]
  %s9 = inlined_call_operand.vmem [shape: f32[32,16], index: 9, kind: input, shape index: {}]
  %s10 = inlined_call_operand.vmem [shape: f32[1,16], index: 10, kind: input, shape index: {}]
  %s11 = inlined_call_operand.vmem [shape: f32[16,8], index: 11, kind: input, shape index: {}]
  %s12 = inlined_call_operand.vmem [shape: f32[1,8], index: 12, kind: input, shape index: {}]
  %s13 = inlined_call_operand.vmem [shape: f32[8,8], index: 13, kind: input, shape index: {}]
  %s14 = inlined_call_operand.vmem [shape: f32[1,8], index: 14, kind: input, shape index: {}]
  %s15 = inlined_call_operand.vmem [shape: f32[8,1], index: 15, kind: input, shape index: {}]
  %s16 = inlined_call_operand.vmem [shape: f32[8,48], index: 16, kind: input, shape index: {}]
  %s17 = inlined_call_operand.vmem [shape: f32[1,48], index: 17, kind: input, shape index: {}]
  %s18 = inlined_call_operand.vmem [shape: f32[16,48], index: 18, kind: input, shape index: {}]
  %s19 = inlined_call_operand.vmem [shape: f32[1,48], index: 19, kind: input, shape index: {}]
  %s20 = inlined_call_operand.vmem [shape: f32[16,8], index: 20, kind: input, shape index: {}]
  %s21 = inlined_call_operand.vmem [shape: f32[1,8], index: 21, kind: input, shape index: {}]
  %s22 = inlined_call_operand.vmem [shape: f32[8,128], index: 22, kind: input, shape index: {}]
  %s23 = inlined_call_operand.<no memory space> [shape: f32[1,1], index: 23, kind: input, shape index: {}]
  %s24 = inlined_call_operand.hbm [shape: f32[5,128], index: 24, kind: output, shape index: {0}]
  %s25 = inlined_call_operand.hbm [shape: f32[8,8], index: 25, kind: output, shape index: {1}]
  %s26 = inlined_call_operand.vmem [shape: f32[5,4], index: 26, kind: output, shape index: {2}]
  %27 = xla_tuple %s24, %s25, %s26
  %s28 = sld [smem:[#allocation0]]
  $region122: #{tpu_custom_call.1} parent=0
    _
  %s30 = ssub.s32 1, %s28
  %s31 = scalar_select 0, %s30, %s28
  %v32 = vstv %s23
  %33 = vst [vmem:[#allocation2] sm:$0x1] %v32
  $region1: #{tpu_custom_call.1} parent=0
    #allocation3 [shape = 'u8[4096]{0}', space=vmem, size = 0x1000, scoped, tag = 'output window, operand 0, single buffered']
    #allocation4 [shape = 's32[1]{0}', space=sflag, size = 0x4, scoped, tag = 'scoped memory for tpu_custom_call.1']
    #allocation5 [shape = 'u8[4096]{0}', space=vmem, size = 0x1000, scoped, tag = 'output window, operand 1, single buffered']
    #allocation6 [shape = 's32[1]{0}', space=sflag, size = 0x4, scoped, tag = 'scoped memory for tpu_custom_call.1']
    %34 = vsyncpa [#allocation4], 0
    %35 = vsyncpa [#allocation6], 0
    // Predicated region
    $region2: #{tpu_custom_call.1} parent=1 // pred_check
      _
    $region3: #{tpu_custom_call.1} parent=1 // pred_check_branch
      %37 = sbr.rel (0) target = $region5
    $region4: #{tpu_custom_call.1} parent=1 // pred_region
      _
    $region5: #{tpu_custom_call.1} parent=1 // pred_fallthru
      _
    // Predicated region
    $region6: #{tpu_custom_call.1} parent=1 // pred_check
      _
    $region7: #{tpu_custom_call.1} parent=1 // pred_check_branch
      %39 = sbr.rel (0) target = $region9
    $region8: #{tpu_custom_call.1} parent=1 // pred_region
      _
    $region9: #{tpu_custom_call.1} parent=1 // pred_fallthru
      _
    // Predicated region
    $region10: #{tpu_custom_call.1} parent=1 // pred_check
      _
    $region11: #{tpu_custom_call.1} parent=1 // pred_check_branch
      %41 = sbr.rel (0) target = $region13
    $region12: #{tpu_custom_call.1} parent=1 // pred_region
      _
    $region13: #{tpu_custom_call.1} parent=1 // pred_fallthru
      _
    // Predicated region
    $region14: #{tpu_custom_call.1} parent=1 // pred_check
      _
    $region15: #{tpu_custom_call.1} parent=1 // pred_check_branch
      %43 = sbr.rel (0) target = $region17
    $region16: #{tpu_custom_call.1} parent=1 // pred_region
      _
    $region17: #{tpu_custom_call.1} parent=1 // pred_fallthru
      _
    // Predicated region
    $region18: #{tpu_custom_call.1} parent=1 // pred_check
      _
    $region19: #{tpu_custom_call.1} parent=1 // pred_check_branch
      %45 = sbr.rel (0) target = $region21
    $region20: #{tpu_custom_call.1} parent=1 // pred_region
      _
    $region21: #{tpu_custom_call.1} parent=1 // pred_fallthru
      _
    // Predicated region
    $region22: #{tpu_custom_call.1} parent=1 // pred_check
      _
    $region23: #{tpu_custom_call.1} parent=1 // pred_check_branch
      %47 = sbr.rel (0) target = $region25
    $region24: #{tpu_custom_call.1} parent=1 // pred_region
      _
    $region25: #{tpu_custom_call.1} parent=1 // pred_fallthru
      _
    // Predicated region
    $region26: #{tpu_custom_call.1} parent=1 // pred_check
      _
    $region27: #{tpu_custom_call.1} parent=1 // pred_check_branch
      %49 = sbr.rel (0) target = $region29
    $region28: #{tpu_custom_call.1} parent=1 // pred_region
      _
    $region29: #{tpu_custom_call.1} parent=1 // pred_fallthru
      _
    // Predicated region
    $region30: #{tpu_custom_call.1} parent=1 // pred_check
      _
    $region31: #{tpu_custom_call.1} parent=1 // pred_check_branch
      %51 = sbr.rel (0) target = $region33
    $region32: #{tpu_custom_call.1} parent=1 // pred_region
      _
    $region33: #{tpu_custom_call.1} parent=1 // pred_fallthru
      _
    // Predicated region
    $region34: #{tpu_custom_call.1} parent=1 // pred_check
      _
    $region35: #{tpu_custom_call.1} parent=1 // pred_check_branch
      %53 = sbr.rel (0) target = $region37
    $region36: #{tpu_custom_call.1} parent=1 // pred_region
      _
    $region37: #{tpu_custom_call.1} parent=1 // pred_fallthru
      _
    // Predicated region
    $region38: #{tpu_custom_call.1} parent=1 // pred_check
      _
    $region39: #{tpu_custom_call.1} parent=1 // pred_check_branch
      %55 = sbr.rel (0) target = $region41
    $region40: #{tpu_custom_call.1} parent=1 // pred_region
      _
    $region41: #{tpu_custom_call.1} parent=1 // pred_fallthru
      _
    // Predicated region
    $region42: #{tpu_custom_call.1} parent=1 // pred_check
      _
    $region43: #{tpu_custom_call.1} parent=1 // pred_check_branch
      %57 = sbr.rel (0) target = $region45
    $region44: #{tpu_custom_call.1} parent=1 // pred_region
      _
    $region45: #{tpu_custom_call.1} parent=1 // pred_fallthru
      _
    // Predicated region
    $region46: #{tpu_custom_call.1} parent=1 // pred_check
      _
    $region47: #{tpu_custom_call.1} parent=1 // pred_check_branch
      %59 = sbr.rel (0) target = $region49
    $region48: #{tpu_custom_call.1} parent=1 // pred_region
      _
    $region49: #{tpu_custom_call.1} parent=1 // pred_fallthru
      _
    // Predicated region
    $region50: #{tpu_custom_call.1} parent=1 // pred_check
      _
    $region51: #{tpu_custom_call.1} parent=1 // pred_check_branch
      %61 = sbr.rel (0) target = $region53
    $region52: #{tpu_custom_call.1} parent=1 // pred_region
      _
    $region53: #{tpu_custom_call.1} parent=1 // pred_fallthru
      _
    // Predicated region
    $region54: #{tpu_custom_call.1} parent=1 // pred_check
      _
    $region55: #{tpu_custom_call.1} parent=1 // pred_check_branch
      %63 = sbr.rel (0) target = $region57
    $region56: #{tpu_custom_call.1} parent=1 // pred_region
      _
    $region57: #{tpu_custom_call.1} parent=1 // pred_fallthru
      _
    // Predicated region
    $region58: #{tpu_custom_call.1} parent=1 // pred_check
      _
    $region59: #{tpu_custom_call.1} parent=1 // pred_check_branch
      %65 = sbr.rel (0) target = $region61
    $region60: #{tpu_custom_call.1} parent=1 // pred_region
      _
    $region61: #{tpu_custom_call.1} parent=1 // pred_fallthru
      _
    // Predicated region
    $region62: #{tpu_custom_call.1} parent=1 // pred_check
      _
    $region63: #{tpu_custom_call.1} parent=1 // pred_check_branch
      %67 = sbr.rel (0) target = $region65
    $region64: #{tpu_custom_call.1} parent=1 // pred_region
      _
    $region65: #{tpu_custom_call.1} parent=1 // pred_fallthru
      _
    // Predicated region
    $region66: #{tpu_custom_call.1} parent=1 // pred_check
      _
    $region67: #{tpu_custom_call.1} parent=1 // pred_check_branch
      %69 = sbr.rel (0) target = $region69
    $region68: #{tpu_custom_call.1} parent=1 // pred_region
      _
    $region69: #{tpu_custom_call.1} parent=1 // pred_fallthru
      _
    // Predicated region
    $region70: #{tpu_custom_call.1} parent=1 // pred_check
      _
    $region71: #{tpu_custom_call.1} parent=1 // pred_check_branch
      %71 = sbr.rel (0) target = $region73
    $region72: #{tpu_custom_call.1} parent=1 // pred_region
      _
    $region73: #{tpu_custom_call.1} parent=1 // pred_fallthru
      _
    // Predicated region
    $region74: #{tpu_custom_call.1} parent=1 // pred_check
      _
    $region75: #{tpu_custom_call.1} parent=1 // pred_check_branch
      %73 = sbr.rel (0) target = $region77
    $region76: #{tpu_custom_call.1} parent=1 // pred_region
      _
    $region77: #{tpu_custom_call.1} parent=1 // pred_fallthru
      _
    // Predicated region
    $region78: #{tpu_custom_call.1} parent=1 // pred_check
      _
    $region79: #{tpu_custom_call.1} parent=1 // pred_check_branch
      %75 = sbr.rel (0) target = $region81
    $region80: #{tpu_custom_call.1} parent=1 // pred_region
      _
    $region81: #{tpu_custom_call.1} parent=1 // pred_fallthru
      _
    // Predicated region
    $region82: #{tpu_custom_call.1} parent=1 // pred_check
      _
    $region83: #{tpu_custom_call.1} parent=1 // pred_check_branch
      %77 = sbr.rel (0) target = $region85
    $region84: #{tpu_custom_call.1} parent=1 // pred_region
      _
    $region85: #{tpu_custom_call.1} parent=1 // pred_fallthru
      _
    // Predicated region
    $region86: #{tpu_custom_call.1} parent=1 // pred_check
      _
    $region87: #{tpu_custom_call.1} parent=1 // pred_check_branch
      %79 = sbr.rel (0) target = $region89
    $region88: #{tpu_custom_call.1} parent=1 // pred_region
      _
    $region89: #{tpu_custom_call.1} parent=1 // pred_fallthru
      _
    // Predicated region
    $region90: #{tpu_custom_call.1} parent=1 // pred_check
      _
    $region91: #{tpu_custom_call.1} parent=1 // pred_check_branch
      %81 = sbr.rel (0) target = $region93
    $region92: #{tpu_custom_call.1} parent=1 // pred_region
      _
    $region93: #{tpu_custom_call.1} parent=1 // pred_fallthru
      _
    // Predicated region
    $region94: #{tpu_custom_call.1} parent=1 // pred_check
      _
    $region95: #{tpu_custom_call.1} parent=1 // pred_check_branch
      %83 = sbr.rel (0) target = $region97
    $region96: #{tpu_custom_call.1} parent=1 // pred_region
      _
    $region97: #{tpu_custom_call.1} parent=1 // pred_fallthru
      _
    %v84 = vld [vmem:[%s0] sm:$0xff]
    %v85 = vld [vmem:[%s1] sm:$0xff]
    %v86 = vld [vmem:[%s1 + $0x8] sm:$0xff]
    %v87 = vld [vmem:[%s1 + $0x10] sm:$0xff]
    %v88 = vld [vmem:[%s1 + $0x18] sm:$0xff]
    %v89 = vld [vmem:[%s1 + $0x20] sm:$0xff]
    %v90 = vld [vmem:[%s1 + $0x28] sm:$0xff]
    %v91 = vld [vmem:[%s1 + $0x30] sm:$0xff]
    %v92 = vld [vmem:[%s1 + $0x38] sm:$0xff]
    %v93 = vld [vmem:[%s1 + $0x40] sm:$0xff]
    %v94 = vld [vmem:[%s1 + $0x48] sm:$0xff]
    %v95 = vld [vmem:[%s1 + $0x50] sm:$0xff]
    %v96 = vld [vmem:[%s1 + $0x58] sm:$0xff]
    %v97 = vld [vmem:[%s1 + $0x60] sm:$0xff]
    %v98 = vld [vmem:[%s1 + $0x68] sm:$0xff]
    %v99 = vld [vmem:[%s1 + $0x70] sm:$0xff]
    %v100 = vld [vmem:[%s1 + $0x78] sm:$0xff]
    %v101 = vld [vmem:[%s1 + $0x80] sm:$0xff]
    %v102 = vld [vmem:[%s1 + $0x88] sm:$0xff]
    %v103 = vld [vmem:[%s1 + $0x90] sm:$0xff]
    %v104 = vld [vmem:[%s1 + $0x98] sm:$0xff]
    %v105 = vld [vmem:[%s1 + $0xa0] sm:$0xff]
    %v106 = vld [vmem:[%s1 + $0xa8] sm:$0xff]
    %v107 = vld [vmem:[%s1 + $0xb0] sm:$0xff]
    %v108 = vld [vmem:[%s1 + $0xb8] sm:$0xff]
    %v109 = vld [vmem:[%s1 + $0xc0] sm:$0xff]
    %v110 = vld [vmem:[%s1 + $0xc8] sm:$0xff]
    %v111 = vld [vmem:[%s1 + $0xd0] sm:$0xff]
    %v112 = vld [vmem:[%s1 + $0xd8] sm:$0xff]
    %v113 = vld [vmem:[%s1 + $0xe0] sm:$0xff]
    %v114 = vld [vmem:[%s1 + $0xe8] sm:$0xff]
    %v115 = vld [vmem:[%s1 + $0xf0] sm:$0xff]
    %v116 = vld [vmem:[%s1 + $0xf8] sm:$0xff]
    %v117 = vld [vmem:[%s1 + $0x100] sm:$0xff]
    %v118 = vld [vmem:[%s1 + $0x108] sm:$0xff]
    %v119 = vld [vmem:[%s1 + $0x110] sm:$0xff]
    %v120 = vld [vmem:[%s1 + $0x118] sm:$0xff]
    %v121 = vld [vmem:[%s1 + $0x120] sm:$0xff]
    %v122 = vld [vmem:[%s1 + $0x128] sm:$0xff]
    %v123 = vld [vmem:[%s1 + $0x130] sm:$0xff]
    %v124 = vld [vmem:[%s1 + $0x138] sm:$0xff]
    %v125 = vld [vmem:[%s1 + $0x140] sm:$0xff]
    %v126 = vld [vmem:[%s1 + $0x148] sm:$0xff]
    %v127 = vld [vmem:[%s1 + $0x150] sm:$0xff]
    %v128 = vld [vmem:[%s1 + $0x158] sm:$0xff]
    %v129 = vld [vmem:[%s1 + $0x160] sm:$0xff]
    %v130 = vld [vmem:[%s1 + $0x168] sm:$0xff]
    %v131 = vld [vmem:[%s1 + $0x170] sm:$0xff]
    %v132 = vld [vmem:[%s1 + $0x178] sm:$0xff]
    %v133 = vld [vmem:[%s1 + $0x180] sm:$0xff]
    %v134 = vld [vmem:[%s1 + $0x188] sm:$0xff]
    %v135 = vld [vmem:[%s1 + $0x190] sm:$0xff]
    %v136 = vld [vmem:[%s1 + $0x198] sm:$0xff]
    %v137 = vld [vmem:[%s1 + $0x1a0] sm:$0xff]
    %v138 = vld [vmem:[%s1 + $0x1a8] sm:$0xff]
    %v139 = vld [vmem:[%s1 + $0x1b0] sm:$0xff]
    %v140 = vld [vmem:[%s1 + $0x1b8] sm:$0xff]
    %v141 = vld [vmem:[%s1 + $0x1c0] sm:$0xff]
    %v142 = vld [vmem:[%s1 + $0x1c8] sm:$0xff]
    %v143 = vld [vmem:[%s1 + $0x1d0] sm:$0xff]
    %v144 = vld [vmem:[%s1 + $0x1d8] sm:$0xff]
    %v145 = vld [vmem:[%s1 + $0x1e0] sm:$0xff]
    %v146 = vld [vmem:[%s1 + $0x1e8] sm:$0xff]
    %v147 = vld [vmem:[%s1 + $0x1f0] sm:$0xff]
    %v148 = vld [vmem:[%s1 + $0x1f8] sm:$0xff]
    %v149 = vld [vmem:[%s2] sm:$0xf]
    %v150 = vld [vmem:[%s3] sm:$0xff]
    %v151 = vld [vmem:[%s3 + $0x8] sm:$0xff]
    %v152 = vld [vmem:[%s3 + $0x10] sm:$0xff]
    %v153 = vld [vmem:[%s3 + $0x18] sm:$0xff]
    %v154 = vld [vmem:[%s3 + $0x20] sm:$0xff]
    %v155 = vld [vmem:[%s3 + $0x28] sm:$0xff]
    %v156 = vld [vmem:[%s3 + $0x30] sm:$0xff]
    %v157 = vld [vmem:[%s3 + $0x38] sm:$0xff]
    %v158 = vld [vmem:[%s3 + $0x40] sm:$0xff]
    %v159 = vld [vmem:[%s3 + $0x48] sm:$0xff]
    %v160 = vld [vmem:[%s3 + $0x50] sm:$0xff]
    %v161 = vld [vmem:[%s3 + $0x58] sm:$0xff]
    %v162 = vld [vmem:[%s3 + $0x60] sm:$0xff]
    %v163 = vld [vmem:[%s3 + $0x68] sm:$0xff]
    %v164 = vld [vmem:[%s3 + $0x70] sm:$0xff]
    %v165 = vld [vmem:[%s3 + $0x78] sm:$0xff]
    %v166 = vld [vmem:[%s3 + $0x80] sm:$0xff]
    %v167 = vld [vmem:[%s3 + $0x88] sm:$0xff]
    %v168 = vld [vmem:[%s3 + $0x90] sm:$0xff]
    %v169 = vld [vmem:[%s3 + $0x98] sm:$0xff]
    %v170 = vld [vmem:[%s3 + $0xa0] sm:$0xff]
    %v171 = vld [vmem:[%s3 + $0xa8] sm:$0xff]
    %v172 = vld [vmem:[%s3 + $0xb0] sm:$0xff]
    %v173 = vld [vmem:[%s3 + $0xb8] sm:$0xff]
    %v174 = vld [vmem:[%s3 + $0xc0] sm:$0xff]
    %v175 = vld [vmem:[%s3 + $0xc8] sm:$0xff]
    %v176 = vld [vmem:[%s3 + $0xd0] sm:$0xff]
    %v177 = vld [vmem:[%s3 + $0xd8] sm:$0xff]
    %v178 = vld [vmem:[%s3 + $0xe0] sm:$0xff]
    %v179 = vld [vmem:[%s3 + $0xe8] sm:$0xff]
    %v180 = vld [vmem:[%s3 + $0xf0] sm:$0xff]
    %v181 = vld [vmem:[%s3 + $0xf8] sm:$0xff]
    %v182 = vld [vmem:[%s3 + $0x100] sm:$0xff]
    %v183 = vld [vmem:[%s3 + $0x108] sm:$0xff]
    %v184 = vld [vmem:[%s3 + $0x110] sm:$0xff]
    %v185 = vld [vmem:[%s3 + $0x118] sm:$0xff]
    %v186 = vld [vmem:[%s3 + $0x120] sm:$0xff]
    %v187 = vld [vmem:[%s3 + $0x128] sm:$0xff]
    %v188 = vld [vmem:[%s3 + $0x130] sm:$0xff]
    %v189 = vld [vmem:[%s3 + $0x138] sm:$0xff]
    %v190 = vld [vmem:[%s3 + $0x140] sm:$0xff]
    %v191 = vld [vmem:[%s3 + $0x148] sm:$0xff]
    %v192 = vld [vmem:[%s3 + $0x150] sm:$0xff]
    %v193 = vld [vmem:[%s3 + $0x158] sm:$0xff]
    %v194 = vld [vmem:[%s3 + $0x160] sm:$0xff]
    %v195 = vld [vmem:[%s3 + $0x168] sm:$0xff]
    %v196 = vld [vmem:[%s3 + $0x170] sm:$0xff]
    %v197 = vld [vmem:[%s3 + $0x178] sm:$0xff]
    %v198 = vld [vmem:[%s3 + $0x180] sm:$0xff]
    %v199 = vld [vmem:[%s3 + $0x188] sm:$0xff]
    %v200 = vld [vmem:[%s3 + $0x190] sm:$0xff]
    %v201 = vld [vmem:[%s3 + $0x198] sm:$0xff]
    %v202 = vld [vmem:[%s3 + $0x1a0] sm:$0xff]
    %v203 = vld [vmem:[%s3 + $0x1a8] sm:$0xff]
    %v204 = vld [vmem:[%s3 + $0x1b0] sm:$0xff]
    %v205 = vld [vmem:[%s3 + $0x1b8] sm:$0xff]
    %v206 = vld [vmem:[%s3 + $0x1c0] sm:$0xff]
    %v207 = vld [vmem:[%s3 + $0x1c8] sm:$0xff]
    %v208 = vld [vmem:[%s3 + $0x1d0] sm:$0xff]
    %v209 = vld [vmem:[%s3 + $0x1d8] sm:$0xff]
    %v210 = vld [vmem:[%s3 + $0x1e0] sm:$0xff]
    %v211 = vld [vmem:[%s3 + $0x1e8] sm:$0xff]
    %v212 = vld [vmem:[%s3 + $0x1f0] sm:$0xff]
    %v213 = vld [vmem:[%s3 + $0x1f8] sm:$0xff]
    %v214 = vld [vmem:[%s4] sm:$0xff]
    %v215 = vld [vmem:[%s4 + $0x8] sm:$0xff]
    %v216 = vld [vmem:[%s5] sm:$0xf]
    %v217 = vld [vmem:[%s6] sm:$0xf]
    %v218 = vld [vmem:[%s7] sm:$0xff]
    %v219 = vld [vmem:[%s7 + $0x8] sm:$0xff]
    %v220 = vld [vmem:[%s7 + $0x10] sm:$0xff]
    %v221 = vld [vmem:[%s7 + $0x18] sm:$0xff]
    %v222 = vld [vmem:[%s7 + $0x20] sm:$0xff]
    %v223 = vld [vmem:[%s7 + $0x28] sm:$0xff]
    %v224 = vld [vmem:[%s7 + $0x30] sm:$0xff]
    %v225 = vld [vmem:[%s7 + $0x38] sm:$0xff]
    %v226 = vld [vmem:[%s7 + $0x40] sm:$0xff]
    %v227 = vld [vmem:[%s7 + $0x48] sm:$0xff]
    %v228 = vld [vmem:[%s7 + $0x50] sm:$0xff]
    %v229 = vld [vmem:[%s7 + $0x58] sm:$0xff]
    %v230 = vld [vmem:[%s7 + $0x60] sm:$0xff]
    %v231 = vld [vmem:[%s7 + $0x68] sm:$0xff]
    %v232 = vld [vmem:[%s7 + $0x70] sm:$0xff]
    %v233 = vld [vmem:[%s7 + $0x78] sm:$0xff]
    %v234 = vld [vmem:[%s7 + $0x80] sm:$0xff]
    %v235 = vld [vmem:[%s7 + $0x88] sm:$0xff]
    %v236 = vld [vmem:[%s7 + $0x90] sm:$0xff]
    %v237 = vld [vmem:[%s7 + $0x98] sm:$0xff]
    %v238 = vld [vmem:[%s7 + $0xa0] sm:$0xff]
    %v239 = vld [vmem:[%s7 + $0xa8] sm:$0xff]
    %v240 = vld [vmem:[%s7 + $0xb0] sm:$0xff]
    %v241 = vld [vmem:[%s7 + $0xb8] sm:$0xff]
    %v242 = vld [vmem:[%s7 + $0xc0] sm:$0xff]
    %v243 = vld [vmem:[%s7 + $0xc8] sm:$0xff]
    %v244 = vld [vmem:[%s7 + $0xd0] sm:$0xff]
    %v245 = vld [vmem:[%s7 + $0xd8] sm:$0xff]
    %v246 = vld [vmem:[%s7 + $0xe0] sm:$0xff]
    %v247 = vld [vmem:[%s7 + $0xe8] sm:$0xff]
    %v248 = vld [vmem:[%s7 + $0xf0] sm:$0xff]
    %v249 = vld [vmem:[%s7 + $0xf8] sm:$0xff]
    %v250 = vld [vmem:[%s7 + $0x100] sm:$0xff]
    %v251 = vld [vmem:[%s7 + $0x108] sm:$0xff]
    %v252 = vld [vmem:[%s7 + $0x110] sm:$0xff]
    %v253 = vld [vmem:[%s7 + $0x118] sm:$0xff]
    %v254 = vld [vmem:[%s7 + $0x120] sm:$0xff]
    %v255 = vld [vmem:[%s7 + $0x128] sm:$0xff]
    %v256 = vld [vmem:[%s7 + $0x130] sm:$0xff]
    %v257 = vld [vmem:[%s7 + $0x138] sm:$0xff]
    %v258 = vld [vmem:[%s7 + $0x140] sm:$0xff]
    %v259 = vld [vmem:[%s7 + $0x148] sm:$0xff]
    %v260 = vld [vmem:[%s7 + $0x150] sm:$0xff]
    %v261 = vld [vmem:[%s7 + $0x158] sm:$0xff]
    %v262 = vld [vmem:[%s7 + $0x160] sm:$0xff]
    %v263 = vld [vmem:[%s7 + $0x168] sm:$0xff]
    %v264 = vld [vmem:[%s7 + $0x170] sm:$0xff]
    %v265 = vld [vmem:[%s7 + $0x178] sm:$0xff]
    %v266 = vld [vmem:[%s7 + $0x180] sm:$0xff]
    %v267 = vld [vmem:[%s7 + $0x188] sm:$0xff]
    %v268 = vld [vmem:[%s7 + $0x190] sm:$0xff]
    %v269 = vld [vmem:[%s7 + $0x198] sm:$0xff]
    %v270 = vld [vmem:[%s7 + $0x1a0] sm:$0xff]
    %v271 = vld [vmem:[%s7 + $0x1a8] sm:$0xff]
    %v272 = vld [vmem:[%s7 + $0x1b0] sm:$0xff]
    %v273 = vld [vmem:[%s7 + $0x1b8] sm:$0xff]
    %v274 = vld [vmem:[%s7 + $0x1c0] sm:$0xff]
    %v275 = vld [vmem:[%s7 + $0x1c8] sm:$0xff]
    %v276 = vld [vmem:[%s7 + $0x1d0] sm:$0xff]
    %v277 = vld [vmem:[%s7 + $0x1d8] sm:$0xff]
    %v278 = vld [vmem:[%s7 + $0x1e0] sm:$0xff]
    %v279 = vld [vmem:[%s7 + $0x1e8] sm:$0xff]
    %v280 = vld [vmem:[%s7 + $0x1f0] sm:$0xff]
    %v281 = vld [vmem:[%s7 + $0x1f8] sm:$0xff]
    %v282 = vld [vmem:[%s8] sm:$0x1]
    %v283 = vld [vmem:[%s9] sm:$0xff]
    %v284 = vld [vmem:[%s9 + $0x8] sm:$0xff]
    %v285 = vld [vmem:[%s9 + $0x10] sm:$0xff]
    %v286 = vld [vmem:[%s9 + $0x18] sm:$0xff]
    %v287 = vld [vmem:[%s10] sm:$0x1]
    %v288 = vld [vmem:[%s11] sm:$0xff]
    %v289 = vld [vmem:[%s11 + $0x8] sm:$0xff]
    %v290 = vld [vmem:[%s12] sm:$0x1]
    %v292 = vlaneseq
    %v293 = vshrl.u32 %v292, 7
    %v294 = vsub.s32 0, %v293
    %v295 = vrot.slane %v149, %v294
    %v296 = vlaneseq
    %v297 = vshrl.u32 %v296, 7
    %v298 = vsub.s32 1, %v297
    %v299 = vrot.slane %v149, %v298
    %v300 = vlaneseq
    %v301 = vshrl.u32 %v300, 7
    %v302 = vsub.s32 2, %v301
    %v303 = vrot.slane %v149, %v302
    %v304 = vlaneseq
    %v305 = vshrl.u32 %v304, 7
    %v306 = vsub.s32 3, %v305
    %v307 = vrot.slane %v149, %v306
    %312 = vmatprep.subr.mxu0 %v86
    %313 = vmatpush1.msra.mxu0 %v85
    %314 = vmatprep.subr.mxu0 %v90
    %315 = vmatpush1.msra.mxu0 %v89
    %316 = vmatprep.subr.mxu0 %v94
    %317 = vmatpush1.msra.mxu0 %v93
    %318 = vmatprep.subr.mxu0 %v98
    %319 = vmatpush1.msra.mxu0 %v97
    %320 = vmatprep.subr.mxu0 %v102
    %321 = vmatpush1.msra.mxu0 %v101
    %322 = vmatprep.subr.mxu0 %v106
    %323 = vmatpush1.msra.mxu0 %v105
    %324 = vmatprep.subr.mxu0 %v110
    %325 = vmatpush1.msra.mxu0 %v109
    %326 = vmatprep.subr.mxu0 %v114
    %327 = vmatpush1.msra.mxu0 %v113
    %328 = vmatprep.subr.mxu0 %v118
    %329 = vmatpush1.msra.mxu0 %v117
    %330 = vmatprep.subr.mxu0 %v122
    %331 = vmatpush1.msra.mxu0 %v121
    %332 = vmatprep.subr.mxu0 %v126
    %333 = vmatpush1.msra.mxu0 %v125
    %334 = vmatprep.subr.mxu0 %v130
    %335 = vmatpush1.msra.mxu0 %v129
    %336 = vmatprep.subr.mxu0 %v134
    %337 = vmatpush1.msra.mxu0 %v133
    %338 = vmatprep.subr.mxu0 %v138
    %339 = vmatpush1.msra.mxu0 %v137
    %340 = vmatprep.subr.mxu0 %v142
    %341 = vmatpush1.msra.mxu0 %v141
    %342 = vmatprep.subr.mxu0 %v146
    %343 = vmatpush1.msra.mxu0 %v145
    %344 = vmatprep.subr.mxu0 0.0
    %345 = vmatpush1.msra.mxu0 0.0
    %346 = vmatprep.subr.mxu0 0.0
    %347 = vmatpush1.msra.mxu0 0.0
    %348 = vmatprep.subr.mxu0 0.0
    %349 = vmatpush1.msra.mxu0 0.0
    %350 = vmatprep.subr.mxu0 0.0
    %351 = vmatpush1.msra.mxu0 0.0
    %352 = vmatprep.subr.mxu0 0.0
    %353 = vmatpush1.msra.mxu0 0.0
    %354 = vmatprep.subr.mxu0 0.0
    %355 = vmatpush1.msra.mxu0 0.0
    %356 = vmatprep.subr.mxu0 0.0
    %357 = vmatpush1.msra.mxu0 0.0
    %358 = vmatprep.subr.mxu0 0.0
    %359 = vmatpush1.msra.mxu0 0.0
    %360 = vmatprep.subr.mxu0 0.0
    %361 = vmatpush1.msra.mxu0 0.0
    %362 = vmatprep.subr.mxu0 0.0
    %363 = vmatpush1.msra.mxu0 0.0
    %364 = vmatprep.subr.mxu0 0.0
    %365 = vmatpush1.msra.mxu0 0.0
    %366 = vmatprep.subr.mxu0 0.0
    %367 = vmatpush1.msra.mxu0 0.0
    %368 = vmatprep.subr.mxu0 0.0
    %369 = vmatpush1.msra.mxu0 0.0
    %370 = vmatprep.subr.mxu0 0.0
    %371 = vmatpush1.msra.mxu0 0.0
    %372 = vmatprep.subr.mxu0 0.0
    %373 = vmatpush1.msra.mxu0 0.0
    %374 = vmatprep.subr.mxu0 0.0
    %375 = vmatpush1.msra.mxu0 0.0
    %376 = vmatprep.mubr.f32.mxu0 0.0
    %377 = vmatmul.mubr.f32.gmra.mrb[0].mxu0 %v84
    %v378 = vpop.f32.mrb[0].mxu0
    %v379 = vadd.f32 %v295, %v378
    %v380 = vpop.f32.mrb[0].mxu0
    %v381 = vadd.f32 %v299, %v380
    %382 = vdwg.mxu0
    %383 = vmatprep.subr.mxu0 %v88
    %384 = vmatpush1.msra.mxu0 %v87
    %385 = vmatprep.subr.mxu0 %v92
    %386 = vmatpush1.msra.mxu0 %v91
    %387 = vmatprep.subr.mxu0 %v96
    %388 = vmatpush1.msra.mxu0 %v95
    %389 = vmatprep.subr.mxu0 %v100
    %390 = vmatpush1.msra.mxu0 %v99
    %391 = vmatprep.subr.mxu0 %v104
    %392 = vmatpush1.msra.mxu0 %v103
    %393 = vmatprep.subr.mxu0 %v108
    %394 = vmatpush1.msra.mxu0 %v107
    %395 = vmatprep.subr.mxu0 %v112
    %396 = vmatpush1.msra.mxu0 %v111
    %397 = vmatprep.subr.mxu0 %v116
    %398 = vmatpush1.msra.mxu0 %v115
    %399 = vmatprep.subr.mxu0 %v120
    %400 = vmatpush1.msra.mxu0 %v119
    %401 = vmatprep.subr.mxu0 %v124
    %402 = vmatpush1.msra.mxu0 %v123
    %403 = vmatprep.subr.mxu0 %v128
    %404 = vmatpush1.msra.mxu0 %v127
    %405 = vmatprep.subr.mxu0 %v132
    %406 = vmatpush1.msra.mxu0 %v131
    %407 = vmatprep.subr.mxu0 %v136
    %408 = vmatpush1.msra.mxu0 %v135
    %409 = vmatprep.subr.mxu0 %v140
    %410 = vmatpush1.msra.mxu0 %v139
    %411 = vmatprep.subr.mxu0 %v144
    %412 = vmatpush1.msra.mxu0 %v143
    %413 = vmatprep.subr.mxu0 %v148
    %414 = vmatpush1.msra.mxu0 %v147
    %415 = vmatprep.subr.mxu0 0.0
    %416 = vmatpush1.msra.mxu0 0.0
    %417 = vmatprep.subr.mxu0 0.0
    %418 = vmatpush1.msra.mxu0 0.0
    %419 = vmatprep.subr.mxu0 0.0
    %420 = vmatpush1.msra.mxu0 0.0
    %421 = vmatprep.subr.mxu0 0.0
    %422 = vmatpush1.msra.mxu0 0.0
    %423 = vmatprep.subr.mxu0 0.0
    %424 = vmatpush1.msra.mxu0 0.0
    %425 = vmatprep.subr.mxu0 0.0
    %426 = vmatpush1.msra.mxu0 0.0
    %427 = vmatprep.subr.mxu0 0.0
    %428 = vmatpush1.msra.mxu0 0.0
    %429 = vmatprep.subr.mxu0 0.0
    %430 = vmatpush1.msra.mxu0 0.0
    %431 = vmatprep.subr.mxu0 0.0
    %432 = vmatpush1.msra.mxu0 0.0
    %433 = vmatprep.subr.mxu0 0.0
    %434 = vmatpush1.msra.mxu0 0.0
    %435 = vmatprep.subr.mxu0 0.0
    %436 = vmatpush1.msra.mxu0 0.0
    %437 = vmatprep.subr.mxu0 0.0
    %438 = vmatpush1.msra.mxu0 0.0
    %439 = vmatprep.subr.mxu0 0.0
    %440 = vmatpush1.msra.mxu0 0.0
    %441 = vmatprep.subr.mxu0 0.0
    %442 = vmatpush1.msra.mxu0 0.0
    %443 = vmatprep.subr.mxu0 0.0
    %444 = vmatpush1.msra.mxu0 0.0
    %445 = vmatprep.subr.mxu0 0.0
    %446 = vmatpush1.msra.mxu0 0.0
    %447 = vmatprep.mubr.f32.mxu0 0.0
    %448 = vmatmul.mubr.f32.gmra.mrb[0].mxu0 %v84
    %v449 = vpop.f32.mrb[0].mxu0
    %v450 = vadd.f32 %v303, %v449
    %v451 = vpop.f32.mrb[0].mxu0
    %v452 = vadd.f32 %v307, %v451
    %453 = vdwg.mxu0
    %v454 = vrot.slane %v379, 4
    %v455 = vadd.f32 %v379, %v454
    %v456 = vrot.slane %v455, 2
    %v457 = vadd.f32 %v455, %v456
    %v458 = vrot.slane %v457, 1
    %v459 = vadd.f32 %v457, %v458
    %v460 = vrot.slane %v381, 4
    %v461 = vadd.f32 %v381, %v460
    %v462 = vrot.slane %v461, 2
    %v463 = vadd.f32 %v461, %v462
    %v464 = vrot.slane %v463, 1
    %v465 = vadd.f32 %v463, %v464
    %v466 = vrot.slane %v450, 4
    %v467 = vadd.f32 %v450, %v466
    %v468 = vrot.slane %v467, 2
    %v469 = vadd.f32 %v467, %v468
    %v470 = vrot.slane %v469, 1
    %v471 = vadd.f32 %v469, %v470
    %v472 = vrot.slane %v452, 4
    %v473 = vadd.f32 %v452, %v472
    %v474 = vrot.slane %v473, 2
    %v475 = vadd.f32 %v473, %v474
    %v476 = vrot.slane %v475, 1
    %v477 = vadd.f32 %v475, %v476
    %v478 = vmul.f32 %v379, %v379
    %v479 = vmul.f32 %v381, %v381
    %v480 = vmul.f32 %v450, %v450
    %v481 = vmul.f32 %v452, %v452
    %v482 = vrot.slane %v478, 4
    %v483 = vadd.f32 %v478, %v482
    %v484 = vrot.slane %v483, 2
    %v485 = vadd.f32 %v483, %v484
    %v486 = vrot.slane %v485, 1
    %v487 = vadd.f32 %v485, %v486
    %v488 = vrot.slane %v479, 4
    %v489 = vadd.f32 %v479, %v488
    %v490 = vrot.slane %v489, 2
    %v491 = vadd.f32 %v489, %v490
    %v492 = vrot.slane %v491, 1
    %v493 = vadd.f32 %v491, %v492
    %v494 = vrot.slane %v480, 4
    %v495 = vadd.f32 %v480, %v494
    %v496 = vrot.slane %v495, 2
    %v497 = vadd.f32 %v495, %v496
    %v498 = vrot.slane %v497, 1
    %v499 = vadd.f32 %v497, %v498
    %v500 = vrot.slane %v481, 4
    %v501 = vadd.f32 %v481, %v500
    %v502 = vrot.slane %v501, 2
    %v503 = vadd.f32 %v501, %v502
    %v504 = vrot.slane %v503, 1
    %v505 = vadd.f32 %v503, %v504
    %506 = vmatprep.subr.mxu0 0.0
    %507 = vmatpush1.msra.mxu0 %v150
    %508 = vmatprep.subr.mxu0 0.0
    %509 = vmatpush1.msra.mxu0 %v151
    %510 = vmatprep.subr.mxu0 0.0
    %511 = vmatpush1.msra.mxu0 %v152
    %512 = vmatprep.subr.mxu0 0.0
    %513 = vmatpush1.msra.mxu0 %v153
    %514 = vmatprep.subr.mxu0 0.0
    %515 = vmatpush1.msra.mxu0 %v154
    %516 = vmatprep.subr.mxu0 0.0
    %517 = vmatpush1.msra.mxu0 %v155
    %518 = vmatprep.subr.mxu0 0.0
    %519 = vmatpush1.msra.mxu0 %v156
    %520 = vmatprep.subr.mxu0 0.0
    %521 = vmatpush1.msra.mxu0 %v157
    %522 = vmatprep.subr.mxu0 0.0
    %523 = vmatpush1.msra.mxu0 %v158
    %524 = vmatprep.subr.mxu0 0.0
    %525 = vmatpush1.msra.mxu0 %v159
    %526 = vmatprep.subr.mxu0 0.0
    %527 = vmatpush1.msra.mxu0 %v160
    %528 = vmatprep.subr.mxu0 0.0
    %529 = vmatpush1.msra.mxu0 %v161
    %530 = vmatprep.subr.mxu0 0.0
    %531 = vmatpush1.msra.mxu0 %v162
    %532 = vmatprep.subr.mxu0 0.0
    %533 = vmatpush1.msra.mxu0 %v163
    %534 = vmatprep.subr.mxu0 0.0
    %535 = vmatpush1.msra.mxu0 %v164
    %536 = vmatprep.subr.mxu0 0.0
    %537 = vmatpush1.msra.mxu0 %v165
    %538 = vmatprep.subr.mxu0 0.0
    %539 = vmatpush1.msra.mxu0 %v166
    %540 = vmatprep.subr.mxu0 0.0
    %541 = vmatpush1.msra.mxu0 %v167
    %542 = vmatprep.subr.mxu0 0.0
    %543 = vmatpush1.msra.mxu0 %v168
    %544 = vmatprep.subr.mxu0 0.0
    %545 = vmatpush1.msra.mxu0 %v169
    %546 = vmatprep.subr.mxu0 0.0
    %547 = vmatpush1.msra.mxu0 %v170
    %548 = vmatprep.subr.mxu0 0.0
    %549 = vmatpush1.msra.mxu0 %v171
    %550 = vmatprep.subr.mxu0 0.0
    %551 = vmatpush1.msra.mxu0 %v172
    %552 = vmatprep.subr.mxu0 0.0
    %553 = vmatpush1.msra.mxu0 %v173
    %554 = vmatprep.subr.mxu0 0.0
    %555 = vmatpush1.msra.mxu0 %v174
    %556 = vmatprep.subr.mxu0 0.0
    %557 = vmatpush1.msra.mxu0 %v175
    %558 = vmatprep.subr.mxu0 0.0
    %559 = vmatpush1.msra.mxu0 %v176
    %560 = vmatprep.subr.mxu0 0.0
    %561 = vmatpush1.msra.mxu0 %v177
    %562 = vmatprep.subr.mxu0 0.0
    %563 = vmatpush1.msra.mxu0 %v178
    %564 = vmatprep.subr.mxu0 0.0
    %565 = vmatpush1.msra.mxu0 %v179
    %566 = vmatprep.subr.mxu0 0.0
    %567 = vmatpush1.msra.mxu0 %v180
    %568 = vmatprep.subr.mxu0 0.0
    %569 = vmatpush1.msra.mxu0 %v181
    %570 = vmatprep.mubr.f32.mxu0 %v465
    %571 = vmatmul.mubr.f32.gmra.mrb[0].mxu0 %v459
    %v572 = vpop.f32.mrb[0].mxu0
    %v573 = vadd.f32 0.0, %v572
    %v574 = vpop.f32.mrb[0].mxu0
    %575 = vdwg.mxu0
    %576 = vmatprep.subr.mxu0 0.0
    %577 = vmatpush1.msra.mxu0 %v182
    %578 = vmatprep.subr.mxu0 0.0
    %579 = vmatpush1.msra.mxu0 %v183
    %580 = vmatprep.subr.mxu0 0.0
    %581 = vmatpush1.msra.mxu0 %v184
    %582 = vmatprep.subr.mxu0 0.0
    %583 = vmatpush1.msra.mxu0 %v185
    %584 = vmatprep.subr.mxu0 0.0
    %585 = vmatpush1.msra.mxu0 %v186
    %586 = vmatprep.subr.mxu0 0.0
    %587 = vmatpush1.msra.mxu0 %v187
    %588 = vmatprep.subr.mxu0 0.0
    %589 = vmatpush1.msra.mxu0 %v188
    %590 = vmatprep.subr.mxu0 0.0
    %591 = vmatpush1.msra.mxu0 %v189
    %592 = vmatprep.subr.mxu0 0.0
    %593 = vmatpush1.msra.mxu0 %v190
    %594 = vmatprep.subr.mxu0 0.0
    %595 = vmatpush1.msra.mxu0 %v191
    %596 = vmatprep.subr.mxu0 0.0
    %597 = vmatpush1.msra.mxu0 %v192
    %598 = vmatprep.subr.mxu0 0.0
    %599 = vmatpush1.msra.mxu0 %v193
    %600 = vmatprep.subr.mxu0 0.0
    %601 = vmatpush1.msra.mxu0 %v194
    %602 = vmatprep.subr.mxu0 0.0
    %603 = vmatpush1.msra.mxu0 %v195
    %604 = vmatprep.subr.mxu0 0.0
    %605 = vmatpush1.msra.mxu0 %v196
    %606 = vmatprep.subr.mxu0 0.0
    %607 = vmatpush1.msra.mxu0 %v197
    %608 = vmatprep.subr.mxu0 0.0
    %609 = vmatpush1.msra.mxu0 %v198
    %610 = vmatprep.subr.mxu0 0.0
    %611 = vmatpush1.msra.mxu0 %v199
    %612 = vmatprep.subr.mxu0 0.0
    %613 = vmatpush1.msra.mxu0 %v200
    %614 = vmatprep.subr.mxu0 0.0
    %615 = vmatpush1.msra.mxu0 %v201
    %616 = vmatprep.subr.mxu0 0.0
    %617 = vmatpush1.msra.mxu0 %v202
    %618 = vmatprep.subr.mxu0 0.0
    %619 = vmatpush1.msra.mxu0 %v203
    %620 = vmatprep.subr.mxu0 0.0
    %621 = vmatpush1.msra.mxu0 %v204
    %622 = vmatprep.subr.mxu0 0.0
    %623 = vmatpush1.msra.mxu0 %v205
    %624 = vmatprep.subr.mxu0 0.0
    %625 = vmatpush1.msra.mxu0 %v206
    %626 = vmatprep.subr.mxu0 0.0
    %627 = vmatpush1.msra.mxu0 %v207
    %628 = vmatprep.subr.mxu0 0.0
    %629 = vmatpush1.msra.mxu0 %v208
    %630 = vmatprep.subr.mxu0 0.0
    %631 = vmatpush1.msra.mxu0 %v209
    %632 = vmatprep.subr.mxu0 0.0
    %633 = vmatpush1.msra.mxu0 %v210
    %634 = vmatprep.subr.mxu0 0.0
    %635 = vmatpush1.msra.mxu0 %v211
    %636 = vmatprep.subr.mxu0 0.0
    %637 = vmatpush1.msra.mxu0 %v212
    %638 = vmatprep.subr.mxu0 0.0
    %639 = vmatpush1.msra.mxu0 %v213
    %640 = vmatprep.mubr.f32.mxu0 %v477
    %641 = vmatmul.mubr.f32.gmra.mrb[0].mxu0 %v471
    %v642 = vpop.f32.mrb[0].mxu0
    %v643 = vadd.f32 %v573, %v642
    %v644 = vpop.f32.mrb[0].mxu0
    %645 = vdwg.mxu0
    %v646 = vmul.f32 %v643, 0.0009765625
    %647 = vmatprep.subr.mxu0 0.0
    %648 = vmatpush1.msra.mxu0 %v150
    %649 = vmatprep.subr.mxu0 0.0
    %650 = vmatpush1.msra.mxu0 %v151
    %651 = vmatprep.subr.mxu0 0.0
    %652 = vmatpush1.msra.mxu0 %v152
    %653 = vmatprep.subr.mxu0 0.0
    %654 = vmatpush1.msra.mxu0 %v153
    %655 = vmatprep.subr.mxu0 0.0
    %656 = vmatpush1.msra.mxu0 %v154
    %657 = vmatprep.subr.mxu0 0.0
    %658 = vmatpush1.msra.mxu0 %v155
    %659 = vmatprep.subr.mxu0 0.0
    %660 = vmatpush1.msra.mxu0 %v156
    %661 = vmatprep.subr.mxu0 0.0
    %662 = vmatpush1.msra.mxu0 %v157
    %663 = vmatprep.subr.mxu0 0.0
    %664 = vmatpush1.msra.mxu0 %v158
    %665 = vmatprep.subr.mxu0 0.0
    %666 = vmatpush1.msra.mxu0 %v159
    %667 = vmatprep.subr.mxu0 0.0
    %668 = vmatpush1.msra.mxu0 %v160
    %669 = vmatprep.subr.mxu0 0.0
    %670 = vmatpush1.msra.mxu0 %v161
    %671 = vmatprep.subr.mxu0 0.0
    %672 = vmatpush1.msra.mxu0 %v162
    %673 = vmatprep.subr.mxu0 0.0
    %674 = vmatpush1.msra.mxu0 %v163
    %675 = vmatprep.subr.mxu0 0.0
    %676 = vmatpush1.msra.mxu0 %v164
    %677 = vmatprep.subr.mxu0 0.0
    %678 = vmatpush1.msra.mxu0 %v165
    %679 = vmatprep.subr.mxu0 0.0
    %680 = vmatpush1.msra.mxu0 %v166
    %681 = vmatprep.subr.mxu0 0.0
    %682 = vmatpush1.msra.mxu0 %v167
    %683 = vmatprep.subr.mxu0 0.0
    %684 = vmatpush1.msra.mxu0 %v168
    %685 = vmatprep.subr.mxu0 0.0
    %686 = vmatpush1.msra.mxu0 %v169
    %687 = vmatprep.subr.mxu0 0.0
    %688 = vmatpush1.msra.mxu0 %v170
    %689 = vmatprep.subr.mxu0 0.0
    %690 = vmatpush1.msra.mxu0 %v171
    %691 = vmatprep.subr.mxu0 0.0
    %692 = vmatpush1.msra.mxu0 %v172
    %693 = vmatprep.subr.mxu0 0.0
    %694 = vmatpush1.msra.mxu0 %v173
    %695 = vmatprep.subr.mxu0 0.0
    %696 = vmatpush1.msra.mxu0 %v174
    %697 = vmatprep.subr.mxu0 0.0
    %698 = vmatpush1.msra.mxu0 %v175
    %699 = vmatprep.subr.mxu0 0.0
    %700 = vmatpush1.msra.mxu0 %v176
    %701 = vmatprep.subr.mxu0 0.0
    %702 = vmatpush1.msra.mxu0 %v177
    %703 = vmatprep.subr.mxu0 0.0
    %704 = vmatpush1.msra.mxu0 %v178
    %705 = vmatprep.subr.mxu0 0.0
    %706 = vmatpush1.msra.mxu0 %v179
    %707 = vmatprep.subr.mxu0 0.0
    %708 = vmatpush1.msra.mxu0 %v180
    %709 = vmatprep.subr.mxu0 0.0
    %710 = vmatpush1.msra.mxu0 %v181
    %711 = vmatprep.mubr.f32.mxu0 %v493
    %712 = vmatmul.mubr.f32.gmra.mrb[0].mxu0 %v487
    %v713 = vpop.f32.mrb[0].mxu0
    %v714 = vadd.f32 0.0, %v713
    %v715 = vpop.f32.mrb[0].mxu0
    %716 = vdwg.mxu0
    %717 = vmatprep.subr.mxu0 0.0
    %718 = vmatpush1.msra.mxu0 %v182
    %719 = vmatprep.subr.mxu0 0.0
    %720 = vmatpush1.msra.mxu0 %v183
    %721 = vmatprep.subr.mxu0 0.0
    %722 = vmatpush1.msra.mxu0 %v184
    %723 = vmatprep.subr.mxu0 0.0
    %724 = vmatpush1.msra.mxu0 %v185
    %725 = vmatprep.subr.mxu0 0.0
    %726 = vmatpush1.msra.mxu0 %v186
    %727 = vmatprep.subr.mxu0 0.0
    %728 = vmatpush1.msra.mxu0 %v187
    %729 = vmatprep.subr.mxu0 0.0
    %730 = vmatpush1.msra.mxu0 %v188
    %731 = vmatprep.subr.mxu0 0.0
    %732 = vmatpush1.msra.mxu0 %v189
    %733 = vmatprep.subr.mxu0 0.0
    %734 = vmatpush1.msra.mxu0 %v190
    %735 = vmatprep.subr.mxu0 0.0
    %736 = vmatpush1.msra.mxu0 %v191
    %737 = vmatprep.subr.mxu0 0.0
    %738 = vmatpush1.msra.mxu0 %v192
    %739 = vmatprep.subr.mxu0 0.0
    %740 = vmatpush1.msra.mxu0 %v193
    %741 = vmatprep.subr.mxu0 0.0
    %742 = vmatpush1.msra.mxu0 %v194
    %743 = vmatprep.subr.mxu0 0.0
    %744 = vmatpush1.msra.mxu0 %v195
    %745 = vmatprep.subr.mxu0 0.0
    %746 = vmatpush1.msra.mxu0 %v196
    %747 = vmatprep.subr.mxu0 0.0
    %748 = vmatpush1.msra.mxu0 %v197
    %749 = vmatprep.subr.mxu0 0.0
    %750 = vmatpush1.msra.mxu0 %v198
    %751 = vmatprep.subr.mxu0 0.0
    %752 = vmatpush1.msra.mxu0 %v199
    %753 = vmatprep.subr.mxu0 0.0
    %754 = vmatpush1.msra.mxu0 %v200
    %755 = vmatprep.subr.mxu0 0.0
    %756 = vmatpush1.msra.mxu0 %v201
    %757 = vmatprep.subr.mxu0 0.0
    %758 = vmatpush1.msra.mxu0 %v202
    %759 = vmatprep.subr.mxu0 0.0
    %760 = vmatpush1.msra.mxu0 %v203
    %761 = vmatprep.subr.mxu0 0.0
    %762 = vmatpush1.msra.mxu0 %v204
    %763 = vmatprep.subr.mxu0 0.0
    %764 = vmatpush1.msra.mxu0 %v205
    %765 = vmatprep.subr.mxu0 0.0
    %766 = vmatpush1.msra.mxu0 %v206
    %767 = vmatprep.subr.mxu0 0.0
    %768 = vmatpush1.msra.mxu0 %v207
    %769 = vmatprep.subr.mxu0 0.0
    %770 = vmatpush1.msra.mxu0 %v208
    %771 = vmatprep.subr.mxu0 0.0
    %772 = vmatpush1.msra.mxu0 %v209
    %773 = vmatprep.subr.mxu0 0.0
    %774 = vmatpush1.msra.mxu0 %v210
    %775 = vmatprep.subr.mxu0 0.0
    %776 = vmatpush1.msra.mxu0 %v211
    %777 = vmatprep.subr.mxu0 0.0
    %778 = vmatpush1.msra.mxu0 %v212
    %779 = vmatprep.subr.mxu0 0.0
    %780 = vmatpush1.msra.mxu0 %v213
    %781 = vmatprep.mubr.f32.mxu0 %v505
    %782 = vmatmul.mubr.f32.gmra.mrb[0].mxu0 %v499
    %v783 = vpop.f32.mrb[0].mxu0
    %v784 = vadd.f32 %v714, %v783
    %v785 = vpop.f32.mrb[0].mxu0
    %786 = vdwg.mxu0
    %v787 = vmul.f32 %v784, 0.0009765625
    %v790 = vcombine.high %v214, %v214
    %v791 = vcombine.high %v215, %v215
    %vm792 = vcmask 31744
    %v794 = vsel %vm792, %v646, 0
    %vm796 = vcmask 1043456
    %v797 = vsel %vm796, %v214, 0
    %v799 = vsel %vm796, %v790, 0
    %v801 = vsel %vm796, %v215, 0
    %v803 = vsel %vm796, %v791, 0
    %805 = vmatprep.subr.mxu0 %v799
    %806 = vmatpush1.msra.mxu0 %v797
    %807 = vmatprep.subr.mxu0 0.0
    %808 = vmatpush1.msra.mxu0 0.0
    %809 = vmatprep.subr.mxu0 0.0
    %810 = vmatpush1.msra.mxu0 0.0
    %811 = vmatprep.subr.mxu0 0.0
    %812 = vmatpush1.msra.mxu0 0.0
    %813 = vmatprep.subr.mxu0 0.0
    %814 = vmatpush1.msra.mxu0 0.0
    %815 = vmatprep.subr.mxu0 0.0
    %816 = vmatpush1.msra.mxu0 0.0
    %817 = vmatprep.subr.mxu0 0.0
    %818 = vmatpush1.msra.mxu0 0.0
    %819 = vmatprep.subr.mxu0 0.0
    %820 = vmatpush1.msra.mxu0 0.0
    %821 = vmatprep.subr.mxu0 0.0
    %822 = vmatpush1.msra.mxu0 0.0
    %823 = vmatprep.subr.mxu0 0.0
    %824 = vmatpush1.msra.mxu0 0.0
    %825 = vmatprep.subr.mxu0 0.0
    %826 = vmatpush1.msra.mxu0 0.0
    %827 = vmatprep.subr.mxu0 0.0
    %828 = vmatpush1.msra.mxu0 0.0
    %829 = vmatprep.subr.mxu0 0.0
    %830 = vmatpush1.msra.mxu0 0.0
    %831 = vmatprep.subr.mxu0 0.0
    %832 = vmatpush1.msra.mxu0 0.0
    %833 = vmatprep.subr.mxu0 0.0
    %834 = vmatpush1.msra.mxu0 0.0
    %835 = vmatprep.subr.mxu0 0.0
    %836 = vmatpush1.msra.mxu0 0.0
    %837 = vmatprep.subr.mxu0 0.0
    %838 = vmatpush1.msra.mxu0 0.0
    %839 = vmatprep.subr.mxu0 0.0
    %840 = vmatpush1.msra.mxu0 0.0
    %841 = vmatprep.subr.mxu0 0.0
    %842 = vmatpush1.msra.mxu0 0.0
    %843 = vmatprep.subr.mxu0 0.0
    %844 = vmatpush1.msra.mxu0 0.0
    %845 = vmatprep.subr.mxu0 0.0
    %846 = vmatpush1.msra.mxu0 0.0
    %847 = vmatprep.subr.mxu0 0.0
    %848 = vmatpush1.msra.mxu0 0.0
    %849 = vmatprep.subr.mxu0 0.0
    %850 = vmatpush1.msra.mxu0 0.0
    %851 = vmatprep.subr.mxu0 0.0
    %852 = vmatpush1.msra.mxu0 0.0
    %853 = vmatprep.subr.mxu0 0.0
    %854 = vmatpush1.msra.mxu0 0.0
    %855 = vmatprep.subr.mxu0 0.0
    %856 = vmatpush1.msra.mxu0 0.0
    %857 = vmatprep.subr.mxu0 0.0
    %858 = vmatpush1.msra.mxu0 0.0
    %859 = vmatprep.subr.mxu0 0.0
    %860 = vmatpush1.msra.mxu0 0.0
    %861 = vmatprep.subr.mxu0 0.0
    %862 = vmatpush1.msra.mxu0 0.0
    %863 = vmatprep.subr.mxu0 0.0
    %864 = vmatpush1.msra.mxu0 0.0
    %865 = vmatprep.subr.mxu0 0.0
    %866 = vmatpush1.msra.mxu0 0.0
    %867 = vmatprep.subr.mxu0 0.0
    %868 = vmatpush1.msra.mxu0 0.0
    %869 = vmatprep.mubr.f32.mxu0 0.0
    %870 = vmatmul.mubr.f32.gmra.mrb[0].mxu0 %v794
    %v871 = vpop.f32.mrb[0].mxu0
    %v872 = vadd.f32 0.0, %v871
    %v873 = vpop.f32.mrb[0].mxu0
    %v874 = vadd.f32 0.0, %v873
    %875 = vdwg.mxu0
    %876 = vmatprep.subr.mxu0 %v803
    %877 = vmatpush1.msra.mxu0 %v801
    %878 = vmatprep.subr.mxu0 0.0
    %879 = vmatpush1.msra.mxu0 0.0
    %880 = vmatprep.subr.mxu0 0.0
    %881 = vmatpush1.msra.mxu0 0.0
    %882 = vmatprep.subr.mxu0 0.0
    %883 = vmatpush1.msra.mxu0 0.0
    %884 = vmatprep.subr.mxu0 0.0
    %885 = vmatpush1.msra.mxu0 0.0
    %886 = vmatprep.subr.mxu0 0.0
    %887 = vmatpush1.msra.mxu0 0.0
    %888 = vmatprep.subr.mxu0 0.0
    %889 = vmatpush1.msra.mxu0 0.0
    %890 = vmatprep.subr.mxu0 0.0
    %891 = vmatpush1.msra.mxu0 0.0
    %892 = vmatprep.subr.mxu0 0.0
    %893 = vmatpush1.msra.mxu0 0.0
    %894 = vmatprep.subr.mxu0 0.0
    %895 = vmatpush1.msra.mxu0 0.0
    %896 = vmatprep.subr.mxu0 0.0
    %897 = vmatpush1.msra.mxu0 0.0
    %898 = vmatprep.subr.mxu0 0.0
    %899 = vmatpush1.msra.mxu0 0.0
    %900 = vmatprep.subr.mxu0 0.0
    %901 = vmatpush1.msra.mxu0 0.0
    %902 = vmatprep.subr.mxu0 0.0
    %903 = vmatpush1.msra.mxu0 0.0
    %904 = vmatprep.subr.mxu0 0.0
    %905 = vmatpush1.msra.mxu0 0.0
    %906 = vmatprep.subr.mxu0 0.0
    %907 = vmatpush1.msra.mxu0 0.0
    %908 = vmatprep.subr.mxu0 0.0
    %909 = vmatpush1.msra.mxu0 0.0
    %910 = vmatprep.subr.mxu0 0.0
    %911 = vmatpush1.msra.mxu0 0.0
    %912 = vmatprep.subr.mxu0 0.0
    %913 = vmatpush1.msra.mxu0 0.0
    %914 = vmatprep.subr.mxu0 0.0
    %915 = vmatpush1.msra.mxu0 0.0
    %916 = vmatprep.subr.mxu0 0.0
    %917 = vmatpush1.msra.mxu0 0.0
    %918 = vmatprep.subr.mxu0 0.0
    %919 = vmatpush1.msra.mxu0 0.0
    %920 = vmatprep.subr.mxu0 0.0
    %921 = vmatpush1.msra.mxu0 0.0
    %922 = vmatprep.subr.mxu0 0.0
    %923 = vmatpush1.msra.mxu0 0.0
    %924 = vmatprep.subr.mxu0 0.0
    %925 = vmatpush1.msra.mxu0 0.0
    %926 = vmatprep.subr.mxu0 0.0
    %927 = vmatpush1.msra.mxu0 0.0
    %928 = vmatprep.subr.mxu0 0.0
    %929 = vmatpush1.msra.mxu0 0.0
    %930 = vmatprep.subr.mxu0 0.0
    %931 = vmatpush1.msra.mxu0 0.0
    %932 = vmatprep.subr.mxu0 0.0
    %933 = vmatpush1.msra.mxu0 0.0
    %934 = vmatprep.subr.mxu0 0.0
    %935 = vmatpush1.msra.mxu0 0.0
    %936 = vmatprep.subr.mxu0 0.0
    %937 = vmatpush1.msra.mxu0 0.0
    %938 = vmatprep.subr.mxu0 0.0
    %939 = vmatpush1.msra.mxu0 0.0
    %940 = vmatprep.mubr.f32.mxu0 0.0
    %941 = vmatmul.mubr.f32.gmra.mrb[0].mxu0 %v794
    %v942 = vpop.f32.mrb[0].mxu0
    %v943 = vadd.f32 0.0, %v942
    %v944 = vpop.f32.mrb[0].mxu0
    %v945 = vadd.f32 0.0, %v944
    %946 = vdwg.mxu0
    %v948 = vsel %vm792, %v787, 0
    %950 = vmatprep.subr.mxu0 %v799
    %951 = vmatpush1.msra.mxu0 %v797
    %952 = vmatprep.subr.mxu0 0.0
    %953 = vmatpush1.msra.mxu0 0.0
    %954 = vmatprep.subr.mxu0 0.0
    %955 = vmatpush1.msra.mxu0 0.0
    %956 = vmatprep.subr.mxu0 0.0
    %957 = vmatpush1.msra.mxu0 0.0
    %958 = vmatprep.subr.mxu0 0.0
    %959 = vmatpush1.msra.mxu0 0.0
    %960 = vmatprep.subr.mxu0 0.0
    %961 = vmatpush1.msra.mxu0 0.0
    %962 = vmatprep.subr.mxu0 0.0
    %963 = vmatpush1.msra.mxu0 0.0
    %964 = vmatprep.subr.mxu0 0.0
    %965 = vmatpush1.msra.mxu0 0.0
    %966 = vmatprep.subr.mxu0 0.0
    %967 = vmatpush1.msra.mxu0 0.0
    %968 = vmatprep.subr.mxu0 0.0
    %969 = vmatpush1.msra.mxu0 0.0
    %970 = vmatprep.subr.mxu0 0.0
    %971 = vmatpush1.msra.mxu0 0.0
    %972 = vmatprep.subr.mxu0 0.0
    %973 = vmatpush1.msra.mxu0 0.0
    %974 = vmatprep.subr.mxu0 0.0
    %975 = vmatpush1.msra.mxu0 0.0
    %976 = vmatprep.subr.mxu0 0.0
    %977 = vmatpush1.msra.mxu0 0.0
    %978 = vmatprep.subr.mxu0 0.0
    %979 = vmatpush1.msra.mxu0 0.0
    %980 = vmatprep.subr.mxu0 0.0
    %981 = vmatpush1.msra.mxu0 0.0
    %982 = vmatprep.subr.mxu0 0.0
    %983 = vmatpush1.msra.mxu0 0.0
    %984 = vmatprep.subr.mxu0 0.0
    %985 = vmatpush1.msra.mxu0 0.0
    %986 = vmatprep.subr.mxu0 0.0
    %987 = vmatpush1.msra.mxu0 0.0
    %988 = vmatprep.subr.mxu0 0.0
    %989 = vmatpush1.msra.mxu0 0.0
    %990 = vmatprep.subr.mxu0 0.0
    %991 = vmatpush1.msra.mxu0 0.0
    %992 = vmatprep.subr.mxu0 0.0
    %993 = vmatpush1.msra.mxu0 0.0
    %994 = vmatprep.subr.mxu0 0.0
    %995 = vmatpush1.msra.mxu0 0.0
    %996 = vmatprep.subr.mxu0 0.0
    %997 = vmatpush1.msra.mxu0 0.0
    %998 = vmatprep.subr.mxu0 0.0
    %999 = vmatpush1.msra.mxu0 0.0
    %1000 = vmatprep.subr.mxu0 0.0
    %1001 = vmatpush1.msra.mxu0 0.0
    %1002 = vmatprep.subr.mxu0 0.0
    %1003 = vmatpush1.msra.mxu0 0.0
    %1004 = vmatprep.subr.mxu0 0.0
    %1005 = vmatpush1.msra.mxu0 0.0
    %1006 = vmatprep.subr.mxu0 0.0
    %1007 = vmatpush1.msra.mxu0 0.0
    %1008 = vmatprep.subr.mxu0 0.0
    %1009 = vmatpush1.msra.mxu0 0.0
    %1010 = vmatprep.subr.mxu0 0.0
    %1011 = vmatpush1.msra.mxu0 0.0
    %1012 = vmatprep.subr.mxu0 0.0
    %1013 = vmatpush1.msra.mxu0 0.0
    %1014 = vmatprep.mubr.f32.mxu0 0.0
    %1015 = vmatmul.mubr.f32.gmra.mrb[0].mxu0 %v948
    %v1016 = vpop.f32.mrb[0].mxu0
    %v1017 = vadd.f32 0.0, %v1016
    %v1018 = vpop.f32.mrb[0].mxu0
    %v1019 = vadd.f32 0.0, %v1018
    %1020 = vdwg.mxu0
    %1021 = vmatprep.subr.mxu0 %v803
    %1022 = vmatpush1.msra.mxu0 %v801
    %1023 = vmatprep.subr.mxu0 0.0
    %1024 = vmatpush1.msra.mxu0 0.0
    %1025 = vmatprep.subr.mxu0 0.0
    %1026 = vmatpush1.msra.mxu0 0.0
    %1027 = vmatprep.subr.mxu0 0.0
    %1028 = vmatpush1.msra.mxu0 0.0
    %1029 = vmatprep.subr.mxu0 0.0
    %1030 = vmatpush1.msra.mxu0 0.0
    %1031 = vmatprep.subr.mxu0 0.0
    %1032 = vmatpush1.msra.mxu0 0.0
    %1033 = vmatprep.subr.mxu0 0.0
    %1034 = vmatpush1.msra.mxu0 0.0
    %1035 = vmatprep.subr.mxu0 0.0
    %1036 = vmatpush1.msra.mxu0 0.0
    %1037 = vmatprep.subr.mxu0 0.0
    %1038 = vmatpush1.msra.mxu0 0.0
    %1039 = vmatprep.subr.mxu0 0.0
    %1040 = vmatpush1.msra.mxu0 0.0
    %1041 = vmatprep.subr.mxu0 0.0
    %1042 = vmatpush1.msra.mxu0 0.0
    %1043 = vmatprep.subr.mxu0 0.0
    %1044 = vmatpush1.msra.mxu0 0.0
    %1045 = vmatprep.subr.mxu0 0.0
    %1046 = vmatpush1.msra.mxu0 0.0
    %1047 = vmatprep.subr.mxu0 0.0
    %1048 = vmatpush1.msra.mxu0 0.0
    %1049 = vmatprep.subr.mxu0 0.0
    %1050 = vmatpush1.msra.mxu0 0.0
    %1051 = vmatprep.subr.mxu0 0.0
    %1052 = vmatpush1.msra.mxu0 0.0
    %1053 = vmatprep.subr.mxu0 0.0
    %1054 = vmatpush1.msra.mxu0 0.0
    %1055 = vmatprep.subr.mxu0 0.0
    %1056 = vmatpush1.msra.mxu0 0.0
    %1057 = vmatprep.subr.mxu0 0.0
    %1058 = vmatpush1.msra.mxu0 0.0
    %1059 = vmatprep.subr.mxu0 0.0
    %1060 = vmatpush1.msra.mxu0 0.0
    %1061 = vmatprep.subr.mxu0 0.0
    %1062 = vmatpush1.msra.mxu0 0.0
    %1063 = vmatprep.subr.mxu0 0.0
    %1064 = vmatpush1.msra.mxu0 0.0
    %1065 = vmatprep.subr.mxu0 0.0
    %1066 = vmatpush1.msra.mxu0 0.0
    %1067 = vmatprep.subr.mxu0 0.0
    %1068 = vmatpush1.msra.mxu0 0.0
    %1069 = vmatprep.subr.mxu0 0.0
    %1070 = vmatpush1.msra.mxu0 0.0
    %1071 = vmatprep.subr.mxu0 0.0
    %1072 = vmatpush1.msra.mxu0 0.0
    %1073 = vmatprep.subr.mxu0 0.0
    %1074 = vmatpush1.msra.mxu0 0.0
    %1075 = vmatprep.subr.mxu0 0.0
    %1076 = vmatpush1.msra.mxu0 0.0
    %1077 = vmatprep.subr.mxu0 0.0
    %1078 = vmatpush1.msra.mxu0 0.0
    %1079 = vmatprep.subr.mxu0 0.0
    %1080 = vmatpush1.msra.mxu0 0.0
    %1081 = vmatprep.subr.mxu0 0.0
    %1082 = vmatpush1.msra.mxu0 0.0
    %1083 = vmatprep.subr.mxu0 0.0
    %1084 = vmatpush1.msra.mxu0 0.0
    %1085 = vmatprep.mubr.f32.mxu0 0.0
    %1086 = vmatmul.mubr.f32.gmra.mrb[0].mxu0 %v948
    %v1087 = vpop.f32.mrb[0].mxu0
    %v1088 = vadd.f32 0.0, %v1087
    %v1089 = vpop.f32.mrb[0].mxu0
    %v1090 = vadd.f32 0.0, %v1089
    %1091 = vdwg.mxu0
    %v1092 = vmul.f32 %v872, %v872
    %v1093 = vmul.f32 %v874, %v874
    %v1094 = vmul.f32 %v943, %v943
    %v1095 = vmul.f32 %v945, %v945
    %v1096 = vsub.f32 %v1017, %v1092
    %v1097 = vsub.f32 %v1019, %v1093
    %v1098 = vsub.f32 %v1088, %v1094
    %v1099 = vsub.f32 %v1090, %v1095
    %v1100 = vadd.f32 %v1096, 1e-05
    %v1101 = vadd.f32 %v1097, 1e-05
    %v1102 = vadd.f32 %v1098, 1e-05
    %v1103 = vadd.f32 %v1099, 1e-05
    %v1104 = vrsqrt.pop %v1100
    %v1105 = vrsqrt.pop %v1101
    %v1106 = vrsqrt.pop %v1102
    %v1107 = vrsqrt.pop %v1103
    %v1112 = vcombine.low %v1104, %v1105
    %v1113 = vcombine.low %v1106, %v1107
    %v1115 = vunpack.c.l.s4 1966171168
    %v1116 = vunpack.c.0.s8 %v1115
    %v1117 = vlaneseq
    %v1118 = vshrl.u32 %v1117, 7
    %v1119 = vsub.s32 %v1116, %v1118
    %v1120 = vrot.slane %v1112, %v1119
    %v1122 = vunpack.c.l.s4 1966171168
    %v1123 = vunpack.c.0.s8 %v1122
    %v1124 = vlaneseq
    %v1125 = vshrl.u32 %v1124, 7
    %v1126 = vsub.s32 %v1123, %v1125
    %v1127 = vrot.slane %v1113, %v1126
    %v1128 = vcombine.low %v1120, %v1127
    %v1130 = vunpack.c.l.s4 1966171168
    %v1131 = vunpack.c.0.s8 %v1130
    %v1132 = vlaneseq
    %v1133 = vshrl.u32 %v1132, 7
    %v1134 = vsub.s32 %v1131, %v1133
    %v1135 = vrot.slane %v1128, %v1134
    %v1137 = vmul.f32 %v216, %v1135
    %v1139 = vlaneseq
    %v1140 = vshrl.u32 %v1139, 7
    %v1141 = vsub.s32 0, %v1140
    %v1142 = vrot.slane %v1137, %v1141
    %v1143 = vlaneseq
    %v1144 = vshrl.u32 %v1143, 7
    %v1145 = vsub.s32 1, %v1144
    %v1146 = vrot.slane %v1137, %v1145
    %v1147 = vlaneseq
    %v1148 = vshrl.u32 %v1147, 7
    %v1149 = vsub.s32 2, %v1148
    %v1150 = vrot.slane %v1137, %v1149
    %v1151 = vlaneseq
    %v1152 = vshrl.u32 %v1151, 7
    %v1153 = vsub.s32 3, %v1152
    %v1154 = vrot.slane %v1137, %v1153
    %v1159 = vmul.f32 %v872, %v1142
    %v1160 = vmul.f32 %v874, %v1146
    %v1161 = vmul.f32 %v943, %v1150
    %v1162 = vmul.f32 %v945, %v1154
    %v1167 = vcombine.low %v1159, %v1160
    %v1168 = vcombine.low %v1161, %v1162
    %v1170 = vunpack.c.l.s4 1966171168
    %v1171 = vunpack.c.0.s8 %v1170
    %v1172 = vlaneseq
    %v1173 = vshrl.u32 %v1172, 7
    %v1174 = vsub.s32 %v1171, %v1173
    %v1175 = vrot.slane %v1167, %v1174
    %v1177 = vunpack.c.l.s4 1966171168
    %v1178 = vunpack.c.0.s8 %v1177
    %v1179 = vlaneseq
    %v1180 = vshrl.u32 %v1179, 7
    %v1181 = vsub.s32 %v1178, %v1180
    %v1182 = vrot.slane %v1168, %v1181
    %v1183 = vcombine.low %v1175, %v1182
    %v1185 = vunpack.c.l.s4 1966171168
    %v1186 = vunpack.c.0.s8 %v1185
    %v1187 = vlaneseq
    %v1188 = vshrl.u32 %v1187, 7
    %v1189 = vsub.s32 %v1186, %v1188
    %v1190 = vrot.slane %v1183, %v1189
    %v1192 = vsub.f32 %v217, %v1190
    %v1193 = vmul.f32 %v379, %v1142
    %v1194 = vmul.f32 %v381, %v1146
    %v1195 = vmul.f32 %v450, %v1150
    %v1196 = vmul.f32 %v452, %v1154
    %v1198 = vlaneseq
    %v1199 = vshrl.u32 %v1198, 7
    %v1200 = vsub.s32 0, %v1199
    %v1201 = vrot.slane %v1192, %v1200
    %v1202 = vlaneseq
    %v1203 = vshrl.u32 %v1202, 7
    %v1204 = vsub.s32 1, %v1203
    %v1205 = vrot.slane %v1192, %v1204
    %v1206 = vlaneseq
    %v1207 = vshrl.u32 %v1206, 7
    %v1208 = vsub.s32 2, %v1207
    %v1209 = vrot.slane %v1192, %v1208
    %v1210 = vlaneseq
    %v1211 = vshrl.u32 %v1210, 7
    %v1212 = vsub.s32 3, %v1211
    %v1213 = vrot.slane %v1192, %v1212
    %v1218 = vadd.f32 %v1193, %v1201
    %v1219 = vadd.f32 %v1194, %v1205
    %v1220 = vadd.f32 %v1195, %v1209
    %v1221 = vadd.f32 %v1196, %v1213
    %v1222 = vmax.f32 %v1218, 0.0
    %v1223 = vmax.f32 %v1219, 0.0
    %v1224 = vmax.f32 %v1220, 0.0
    %v1225 = vmax.f32 %v1221, 0.0
    %v1227 = vlaneseq
    %v1228 = vshrl.u32 %v1227, 7
    %v1229 = vsub.s32 0, %v1228
    %v1230 = vrot.slane %v282, %v1229
    %1232 = vmatprep.subr.mxu0 0.0
    %1233 = vmatpush1.msra.mxu0 %v218
    %1234 = vmatprep.subr.mxu0 0.0
    %1235 = vmatpush1.msra.mxu0 %v219
    %1236 = vmatprep.subr.mxu0 0.0
    %1237 = vmatpush1.msra.mxu0 %v220
    %1238 = vmatprep.subr.mxu0 0.0
    %1239 = vmatpush1.msra.mxu0 %v221
    %1240 = vmatprep.subr.mxu0 0.0
    %1241 = vmatpush1.msra.mxu0 %v222
    %1242 = vmatprep.subr.mxu0 0.0
    %1243 = vmatpush1.msra.mxu0 %v223
    %1244 = vmatprep.subr.mxu0 0.0
    %1245 = vmatpush1.msra.mxu0 %v224
    %1246 = vmatprep.subr.mxu0 0.0
    %1247 = vmatpush1.msra.mxu0 %v225
    %1248 = vmatprep.subr.mxu0 0.0
    %1249 = vmatpush1.msra.mxu0 %v226
    %1250 = vmatprep.subr.mxu0 0.0
    %1251 = vmatpush1.msra.mxu0 %v227
    %1252 = vmatprep.subr.mxu0 0.0
    %1253 = vmatpush1.msra.mxu0 %v228
    %1254 = vmatprep.subr.mxu0 0.0
    %1255 = vmatpush1.msra.mxu0 %v229
    %1256 = vmatprep.subr.mxu0 0.0
    %1257 = vmatpush1.msra.mxu0 %v230
    %1258 = vmatprep.subr.mxu0 0.0
    %1259 = vmatpush1.msra.mxu0 %v231
    %1260 = vmatprep.subr.mxu0 0.0
    %1261 = vmatpush1.msra.mxu0 %v232
    %1262 = vmatprep.subr.mxu0 0.0
    %1263 = vmatpush1.msra.mxu0 %v233
    %1264 = vmatprep.subr.mxu0 0.0
    %1265 = vmatpush1.msra.mxu0 %v234
    %1266 = vmatprep.subr.mxu0 0.0
    %1267 = vmatpush1.msra.mxu0 %v235
    %1268 = vmatprep.subr.mxu0 0.0
    %1269 = vmatpush1.msra.mxu0 %v236
    %1270 = vmatprep.subr.mxu0 0.0
    %1271 = vmatpush1.msra.mxu0 %v237
    %1272 = vmatprep.subr.mxu0 0.0
    %1273 = vmatpush1.msra.mxu0 %v238
    %1274 = vmatprep.subr.mxu0 0.0
    %1275 = vmatpush1.msra.mxu0 %v239
    %1276 = vmatprep.subr.mxu0 0.0
    %1277 = vmatpush1.msra.mxu0 %v240
    %1278 = vmatprep.subr.mxu0 0.0
    %1279 = vmatpush1.msra.mxu0 %v241
    %1280 = vmatprep.subr.mxu0 0.0
    %1281 = vmatpush1.msra.mxu0 %v242
    %1282 = vmatprep.subr.mxu0 0.0
    %1283 = vmatpush1.msra.mxu0 %v243
    %1284 = vmatprep.subr.mxu0 0.0
    %1285 = vmatpush1.msra.mxu0 %v244
    %1286 = vmatprep.subr.mxu0 0.0
    %1287 = vmatpush1.msra.mxu0 %v245
    %1288 = vmatprep.subr.mxu0 0.0
    %1289 = vmatpush1.msra.mxu0 %v246
    %1290 = vmatprep.subr.mxu0 0.0
    %1291 = vmatpush1.msra.mxu0 %v247
    %1292 = vmatprep.subr.mxu0 0.0
    %1293 = vmatpush1.msra.mxu0 %v248
    %1294 = vmatprep.subr.mxu0 0.0
    %1295 = vmatpush1.msra.mxu0 %v249
    %1296 = vmatprep.mubr.f32.mxu0 %v1223
    %1297 = vmatmul.mubr.f32.gmra.mrb[0].mxu0 %v1222
    %v1298 = vpop.f32.mrb[0].mxu0
    %v1299 = vadd.f32 %v1230, %v1298
    %v1300 = vpop.f32.mrb[0].mxu0
    %1301 = vdwg.mxu0
    %1302 = vmatprep.subr.mxu0 0.0
    %1303 = vmatpush1.msra.mxu0 %v250
    %1304 = vmatprep.subr.mxu0 0.0
    %1305 = vmatpush1.msra.mxu0 %v251
    %1306 = vmatprep.subr.mxu0 0.0
    %1307 = vmatpush1.msra.mxu0 %v252
    %1308 = vmatprep.subr.mxu0 0.0
    %1309 = vmatpush1.msra.mxu0 %v253
    %1310 = vmatprep.subr.mxu0 0.0
    %1311 = vmatpush1.msra.mxu0 %v254
    %1312 = vmatprep.subr.mxu0 0.0
    %1313 = vmatpush1.msra.mxu0 %v255
    %1314 = vmatprep.subr.mxu0 0.0
    %1315 = vmatpush1.msra.mxu0 %v256
    %1316 = vmatprep.subr.mxu0 0.0
    %1317 = vmatpush1.msra.mxu0 %v257
    %1318 = vmatprep.subr.mxu0 0.0
    %1319 = vmatpush1.msra.mxu0 %v258
    %1320 = vmatprep.subr.mxu0 0.0
    %1321 = vmatpush1.msra.mxu0 %v259
    %1322 = vmatprep.subr.mxu0 0.0
    %1323 = vmatpush1.msra.mxu0 %v260
    %1324 = vmatprep.subr.mxu0 0.0
    %1325 = vmatpush1.msra.mxu0 %v261
    %1326 = vmatprep.subr.mxu0 0.0
    %1327 = vmatpush1.msra.mxu0 %v262
    %1328 = vmatprep.subr.mxu0 0.0
    %1329 = vmatpush1.msra.mxu0 %v263
    %1330 = vmatprep.subr.mxu0 0.0
    %1331 = vmatpush1.msra.mxu0 %v264
    %1332 = vmatprep.subr.mxu0 0.0
    %1333 = vmatpush1.msra.mxu0 %v265
    %1334 = vmatprep.subr.mxu0 0.0
    %1335 = vmatpush1.msra.mxu0 %v266
    %1336 = vmatprep.subr.mxu0 0.0
    %1337 = vmatpush1.msra.mxu0 %v267
    %1338 = vmatprep.subr.mxu0 0.0
    %1339 = vmatpush1.msra.mxu0 %v268
    %1340 = vmatprep.subr.mxu0 0.0
    %1341 = vmatpush1.msra.mxu0 %v269
    %1342 = vmatprep.subr.mxu0 0.0
    %1343 = vmatpush1.msra.mxu0 %v270
    %1344 = vmatprep.subr.mxu0 0.0
    %1345 = vmatpush1.msra.mxu0 %v271
    %1346 = vmatprep.subr.mxu0 0.0
    %1347 = vmatpush1.msra.mxu0 %v272
    %1348 = vmatprep.subr.mxu0 0.0
    %1349 = vmatpush1.msra.mxu0 %v273
    %1350 = vmatprep.subr.mxu0 0.0
    %1351 = vmatpush1.msra.mxu0 %v274
    %1352 = vmatprep.subr.mxu0 0.0
    %1353 = vmatpush1.msra.mxu0 %v275
    %1354 = vmatprep.subr.mxu0 0.0
    %1355 = vmatpush1.msra.mxu0 %v276
    %1356 = vmatprep.subr.mxu0 0.0
    %1357 = vmatpush1.msra.mxu0 %v277
    %1358 = vmatprep.subr.mxu0 0.0
    %1359 = vmatpush1.msra.mxu0 %v278
    %1360 = vmatprep.subr.mxu0 0.0
    %1361 = vmatpush1.msra.mxu0 %v279
    %1362 = vmatprep.subr.mxu0 0.0
    %1363 = vmatpush1.msra.mxu0 %v280
    %1364 = vmatprep.subr.mxu0 0.0
    %1365 = vmatpush1.msra.mxu0 %v281
    %1366 = vmatprep.mubr.f32.mxu0 %v1225
    %1367 = vmatmul.mubr.f32.gmra.mrb[0].mxu0 %v1224
    %v1368 = vpop.f32.mrb[0].mxu0
    %v1369 = vadd.f32 %v1299, %v1368
    %v1370 = vpop.f32.mrb[0].mxu0
    %1371 = vdwg.mxu0
    %v1372 = vmax.f32 %v1369, 0.0
    %v1374 = vlaneseq
    %v1375 = vshrl.u32 %v1374, 7
    %v1376 = vsub.s32 0, %v1375
    %v1377 = vrot.slane %v287, %v1376
    %vm1379 = vcmask 261120
    %v1381 = vsel %vm1379, %v1372, 0
    %1383 = vmatprep.subr.mxu0 0.0
    %1384 = vmatpush1.msra.mxu0 %v283
    %1385 = vmatprep.subr.mxu0 0.0
    %1386 = vmatpush1.msra.mxu0 %v284
    %1387 = vmatprep.subr.mxu0 0.0
    %1388 = vmatpush1.msra.mxu0 %v285
    %1389 = vmatprep.subr.mxu0 0.0
    %1390 = vmatpush1.msra.mxu0 %v286
    %1391 = vmatprep.subr.mxu0 0.0
    %1392 = vmatpush1.msra.mxu0 0.0
    %1393 = vmatprep.subr.mxu0 0.0
    %1394 = vmatpush1.msra.mxu0 0.0
    %1395 = vmatprep.subr.mxu0 0.0
    %1396 = vmatpush1.msra.mxu0 0.0
    %1397 = vmatprep.subr.mxu0 0.0
    %1398 = vmatpush1.msra.mxu0 0.0
    %1399 = vmatprep.subr.mxu0 0.0
    %1400 = vmatpush1.msra.mxu0 0.0
    %1401 = vmatprep.subr.mxu0 0.0
    %1402 = vmatpush1.msra.mxu0 0.0
    %1403 = vmatprep.subr.mxu0 0.0
    %1404 = vmatpush1.msra.mxu0 0.0
    %1405 = vmatprep.subr.mxu0 0.0
    %1406 = vmatpush1.msra.mxu0 0.0
    %1407 = vmatprep.subr.mxu0 0.0
    %1408 = vmatpush1.msra.mxu0 0.0
    %1409 = vmatprep.subr.mxu0 0.0
    %1410 = vmatpush1.msra.mxu0 0.0
    %1411 = vmatprep.subr.mxu0 0.0
    %1412 = vmatpush1.msra.mxu0 0.0
    %1413 = vmatprep.subr.mxu0 0.0
    %1414 = vmatpush1.msra.mxu0 0.0
    %1415 = vmatprep.subr.mxu0 0.0
    %1416 = vmatpush1.msra.mxu0 0.0
    %1417 = vmatprep.subr.mxu0 0.0
    %1418 = vmatpush1.msra.mxu0 0.0
    %1419 = vmatprep.subr.mxu0 0.0
    %1420 = vmatpush1.msra.mxu0 0.0
    %1421 = vmatprep.subr.mxu0 0.0
    %1422 = vmatpush1.msra.mxu0 0.0
    %1423 = vmatprep.subr.mxu0 0.0
    %1424 = vmatpush1.msra.mxu0 0.0
    %1425 = vmatprep.subr.mxu0 0.0
    %1426 = vmatpush1.msra.mxu0 0.0
    %1427 = vmatprep.subr.mxu0 0.0
    %1428 = vmatpush1.msra.mxu0 0.0
    %1429 = vmatprep.subr.mxu0 0.0
    %1430 = vmatpush1.msra.mxu0 0.0
    %1431 = vmatprep.subr.mxu0 0.0
    %1432 = vmatpush1.msra.mxu0 0.0
    %1433 = vmatprep.subr.mxu0 0.0
    %1434 = vmatpush1.msra.mxu0 0.0
    %1435 = vmatprep.subr.mxu0 0.0
    %1436 = vmatpush1.msra.mxu0 0.0
    %1437 = vmatprep.subr.mxu0 0.0
    %1438 = vmatpush1.msra.mxu0 0.0
    %1439 = vmatprep.subr.mxu0 0.0
    %1440 = vmatpush1.msra.mxu0 0.0
    %1441 = vmatprep.subr.mxu0 0.0
    %1442 = vmatpush1.msra.mxu0 0.0
    %1443 = vmatprep.subr.mxu0 0.0
    %1444 = vmatpush1.msra.mxu0 0.0
    %1445 = vmatprep.subr.mxu0 0.0
    %1446 = vmatpush1.msra.mxu0 0.0
    %1447 = vmatprep.mubr.f32.mxu0 0.0
    %1448 = vmatmul.mubr.f32.gmra.mrb[0].mxu0 %v1381
    %v1449 = vpop.f32.mrb[0].mxu0
    %v1450 = vadd.f32 %v1377, %v1449
    %v1451 = vpop.f32.mrb[0].mxu0
    %1452 = vdwg.mxu0
    %v1453 = vmax.f32 %v1450, 0.0
    %v1455 = vlaneseq
    %v1456 = vshrl.u32 %v1455, 7
    %v1457 = vsub.s32 0, %v1456
    %v1458 = vrot.slane %v290, %v1457
    %vm1460 = vcmask 130048
    %v1462 = vsel %vm1460, %v1453, 0
    %1464 = vmatprep.subr.mxu0 0.0
    %1465 = vmatpush1.msra.mxu0 %v288
    %1466 = vmatprep.subr.mxu0 0.0
    %1467 = vmatpush1.msra.mxu0 %v289
    %1468 = vmatprep.subr.mxu0 0.0
    %1469 = vmatpush1.msra.mxu0 0.0
    %1470 = vmatprep.subr.mxu0 0.0
    %1471 = vmatpush1.msra.mxu0 0.0
    %1472 = vmatprep.subr.mxu0 0.0
    %1473 = vmatpush1.msra.mxu0 0.0
    %1474 = vmatprep.subr.mxu0 0.0
    %1475 = vmatpush1.msra.mxu0 0.0
    %1476 = vmatprep.subr.mxu0 0.0
    %1477 = vmatpush1.msra.mxu0 0.0
    %1478 = vmatprep.subr.mxu0 0.0
    %1479 = vmatpush1.msra.mxu0 0.0
    %1480 = vmatprep.subr.mxu0 0.0
    %1481 = vmatpush1.msra.mxu0 0.0
    %1482 = vmatprep.subr.mxu0 0.0
    %1483 = vmatpush1.msra.mxu0 0.0
    %1484 = vmatprep.subr.mxu0 0.0
    %1485 = vmatpush1.msra.mxu0 0.0
    %1486 = vmatprep.subr.mxu0 0.0
    %1487 = vmatpush1.msra.mxu0 0.0
    %1488 = vmatprep.subr.mxu0 0.0
    %1489 = vmatpush1.msra.mxu0 0.0
    %1490 = vmatprep.subr.mxu0 0.0
    %1491 = vmatpush1.msra.mxu0 0.0
    %1492 = vmatprep.subr.mxu0 0.0
    %1493 = vmatpush1.msra.mxu0 0.0
    %1494 = vmatprep.subr.mxu0 0.0
    %1495 = vmatpush1.msra.mxu0 0.0
    %1496 = vmatprep.subr.mxu0 0.0
    %1497 = vmatpush1.msra.mxu0 0.0
    %1498 = vmatprep.subr.mxu0 0.0
    %1499 = vmatpush1.msra.mxu0 0.0
    %1500 = vmatprep.subr.mxu0 0.0
    %1501 = vmatpush1.msra.mxu0 0.0
    %1502 = vmatprep.subr.mxu0 0.0
    %1503 = vmatpush1.msra.mxu0 0.0
    %1504 = vmatprep.subr.mxu0 0.0
    %1505 = vmatpush1.msra.mxu0 0.0
    %1506 = vmatprep.subr.mxu0 0.0
    %1507 = vmatpush1.msra.mxu0 0.0
    %1508 = vmatprep.subr.mxu0 0.0
    %1509 = vmatpush1.msra.mxu0 0.0
    %1510 = vmatprep.subr.mxu0 0.0
    %1511 = vmatpush1.msra.mxu0 0.0
    %1512 = vmatprep.subr.mxu0 0.0
    %1513 = vmatpush1.msra.mxu0 0.0
    %1514 = vmatprep.subr.mxu0 0.0
    %1515 = vmatpush1.msra.mxu0 0.0
    %1516 = vmatprep.subr.mxu0 0.0
    %1517 = vmatpush1.msra.mxu0 0.0
    %1518 = vmatprep.subr.mxu0 0.0
    %1519 = vmatpush1.msra.mxu0 0.0
    %1520 = vmatprep.subr.mxu0 0.0
    %1521 = vmatpush1.msra.mxu0 0.0
    %1522 = vmatprep.subr.mxu0 0.0
    %1523 = vmatpush1.msra.mxu0 0.0
    %1524 = vmatprep.subr.mxu0 0.0
    %1525 = vmatpush1.msra.mxu0 0.0
    %1526 = vmatprep.subr.mxu0 0.0
    %1527 = vmatpush1.msra.mxu0 0.0
    %1528 = vmatprep.mubr.f32.mxu0 0.0
    %1529 = vmatmul.mubr.f32.gmra.mrb[0].mxu0 %v1462
    %v1530 = vpop.f32.mrb[0].mxu0
    %v1531 = vadd.f32 %v1458, %v1530
    %v1532 = vpop.f32.mrb[0].mxu0
    %1533 = vdwg.mxu0
    %vm1534 = vcmask 64512
    %1535 = vst.msk [vmem:[#allocation5] sm:$0xff] %vm1534, %v1531
    %v1536 = vld [vmem:[%s13] sm:$0xff]
    %v1537 = vld [vmem:[%s14] sm:$0x1]
    %v1539 = vlaneseq
    %v1540 = vshrl.u32 %v1539, 7
    %v1541 = vsub.s32 0, %v1540
    %v1542 = vrot.slane %v1537, %v1541
    %v1545 = vsel %vm1534, %v1531, 0
    %1547 = vmatprep.subr.mxu0 0.0
    %1548 = vmatpush1.msra.mxu0 %v1536
    %1549 = vmatprep.subr.mxu0 0.0
    %1550 = vmatpush1.msra.mxu0 0.0
    %1551 = vmatprep.subr.mxu0 0.0
    %1552 = vmatpush1.msra.mxu0 0.0
    %1553 = vmatprep.subr.mxu0 0.0
    %1554 = vmatpush1.msra.mxu0 0.0
    %1555 = vmatprep.subr.mxu0 0.0
    %1556 = vmatpush1.msra.mxu0 0.0
    %1557 = vmatprep.subr.mxu0 0.0
    %1558 = vmatpush1.msra.mxu0 0.0
    %1559 = vmatprep.subr.mxu0 0.0
    %1560 = vmatpush1.msra.mxu0 0.0
    %1561 = vmatprep.subr.mxu0 0.0
    %1562 = vmatpush1.msra.mxu0 0.0
    %1563 = vmatprep.subr.mxu0 0.0
    %1564 = vmatpush1.msra.mxu0 0.0
    %1565 = vmatprep.subr.mxu0 0.0
    %1566 = vmatpush1.msra.mxu0 0.0
    %1567 = vmatprep.subr.mxu0 0.0
    %1568 = vmatpush1.msra.mxu0 0.0
    %1569 = vmatprep.subr.mxu0 0.0
    %1570 = vmatpush1.msra.mxu0 0.0
    %1571 = vmatprep.subr.mxu0 0.0
    %1572 = vmatpush1.msra.mxu0 0.0
    %1573 = vmatprep.subr.mxu0 0.0
    %1574 = vmatpush1.msra.mxu0 0.0
    %1575 = vmatprep.subr.mxu0 0.0
    %1576 = vmatpush1.msra.mxu0 0.0
    %1577 = vmatprep.subr.mxu0 0.0
    %1578 = vmatpush1.msra.mxu0 0.0
    %1579 = vmatprep.subr.mxu0 0.0
    %1580 = vmatpush1.msra.mxu0 0.0
    %1581 = vmatprep.subr.mxu0 0.0
    %1582 = vmatpush1.msra.mxu0 0.0
    %1583 = vmatprep.subr.mxu0 0.0
    %1584 = vmatpush1.msra.mxu0 0.0
    %1585 = vmatprep.subr.mxu0 0.0
    %1586 = vmatpush1.msra.mxu0 0.0
    %1587 = vmatprep.subr.mxu0 0.0
    %1588 = vmatpush1.msra.mxu0 0.0
    %1589 = vmatprep.subr.mxu0 0.0
    %1590 = vmatpush1.msra.mxu0 0.0
    %1591 = vmatprep.subr.mxu0 0.0
    %1592 = vmatpush1.msra.mxu0 0.0
    %1593 = vmatprep.subr.mxu0 0.0
    %1594 = vmatpush1.msra.mxu0 0.0
    %1595 = vmatprep.subr.mxu0 0.0
    %1596 = vmatpush1.msra.mxu0 0.0
    %1597 = vmatprep.subr.mxu0 0.0
    %1598 = vmatpush1.msra.mxu0 0.0
    %1599 = vmatprep.subr.mxu0 0.0
    %1600 = vmatpush1.msra.mxu0 0.0
    %1601 = vmatprep.subr.mxu0 0.0
    %1602 = vmatpush1.msra.mxu0 0.0
    %1603 = vmatprep.subr.mxu0 0.0
    %1604 = vmatpush1.msra.mxu0 0.0
    %1605 = vmatprep.subr.mxu0 0.0
    %1606 = vmatpush1.msra.mxu0 0.0
    %1607 = vmatprep.subr.mxu0 0.0
    %1608 = vmatpush1.msra.mxu0 0.0
    %1609 = vmatprep.subr.mxu0 0.0
    %1610 = vmatpush1.msra.mxu0 0.0
    %1611 = vmatprep.mubr.f32.mxu0 0.0
    %1612 = vmatmul.mubr.f32.gmra.mrb[0].mxu0 %v1545
    %v1613 = vpop.f32.mrb[0].mxu0
    %v1614 = vadd.f32 %v1542, %v1613
    %v1615 = vpop.f32.mrb[0].mxu0
    %1616 = vdwg.mxu0
    %v1617 = vtanh.pop %v1614
    %v1618 = vld [vmem:[%s15] sm:$0xff]
    %v1620 = vsel %vm1534, %v1617, 0
    %1622 = vmatprep.subr.mxu0 0.0
    %1623 = vmatpush1.msra.mxu0 %v1618
    %1624 = vmatprep.subr.mxu0 0.0
    %1625 = vmatpush1.msra.mxu0 0.0
    %1626 = vmatprep.subr.mxu0 0.0
    %1627 = vmatpush1.msra.mxu0 0.0
    %1628 = vmatprep.subr.mxu0 0.0
    %1629 = vmatpush1.msra.mxu0 0.0
    %1630 = vmatprep.subr.mxu0 0.0
    %1631 = vmatpush1.msra.mxu0 0.0
    %1632 = vmatprep.subr.mxu0 0.0
    %1633 = vmatpush1.msra.mxu0 0.0
    %1634 = vmatprep.subr.mxu0 0.0
    %1635 = vmatpush1.msra.mxu0 0.0
    %1636 = vmatprep.subr.mxu0 0.0
    %1637 = vmatpush1.msra.mxu0 0.0
    %1638 = vmatprep.subr.mxu0 0.0
    %1639 = vmatpush1.msra.mxu0 0.0
    %1640 = vmatprep.subr.mxu0 0.0
    %1641 = vmatpush1.msra.mxu0 0.0
    %1642 = vmatprep.subr.mxu0 0.0
    %1643 = vmatpush1.msra.mxu0 0.0
    %1644 = vmatprep.subr.mxu0 0.0
    %1645 = vmatpush1.msra.mxu0 0.0
    %1646 = vmatprep.subr.mxu0 0.0
    %1647 = vmatpush1.msra.mxu0 0.0
    %1648 = vmatprep.subr.mxu0 0.0
    %1649 = vmatpush1.msra.mxu0 0.0
    %1650 = vmatprep.subr.mxu0 0.0
    %1651 = vmatpush1.msra.mxu0 0.0
    %1652 = vmatprep.subr.mxu0 0.0
    %1653 = vmatpush1.msra.mxu0 0.0
    %1654 = vmatprep.subr.mxu0 0.0
    %1655 = vmatpush1.msra.mxu0 0.0
    %1656 = vmatprep.subr.mxu0 0.0
    %1657 = vmatpush1.msra.mxu0 0.0
    %1658 = vmatprep.subr.mxu0 0.0
    %1659 = vmatpush1.msra.mxu0 0.0
    %1660 = vmatprep.subr.mxu0 0.0
    %1661 = vmatpush1.msra.mxu0 0.0
    %1662 = vmatprep.subr.mxu0 0.0
    %1663 = vmatpush1.msra.mxu0 0.0
    %1664 = vmatprep.subr.mxu0 0.0
    %1665 = vmatpush1.msra.mxu0 0.0
    %1666 = vmatprep.subr.mxu0 0.0
    %1667 = vmatpush1.msra.mxu0 0.0
    %1668 = vmatprep.subr.mxu0 0.0
    %1669 = vmatpush1.msra.mxu0 0.0
    %1670 = vmatprep.subr.mxu0 0.0
    %1671 = vmatpush1.msra.mxu0 0.0
    %1672 = vmatprep.subr.mxu0 0.0
    %1673 = vmatpush1.msra.mxu0 0.0
    %1674 = vmatprep.subr.mxu0 0.0
    %1675 = vmatpush1.msra.mxu0 0.0
    %1676 = vmatprep.subr.mxu0 0.0
    %1677 = vmatpush1.msra.mxu0 0.0
    %1678 = vmatprep.subr.mxu0 0.0
    %1679 = vmatpush1.msra.mxu0 0.0
    %1680 = vmatprep.subr.mxu0 0.0
    %1681 = vmatpush1.msra.mxu0 0.0
    %1682 = vmatprep.subr.mxu0 0.0
    %1683 = vmatpush1.msra.mxu0 0.0
    %1684 = vmatprep.subr.mxu0 0.0
    %1685 = vmatpush1.msra.mxu0 0.0
    %1686 = vmatprep.mubr.f32.mxu0 0.0
    %1687 = vmatmul.mubr.f32.gmra.mrb[0].mxu0 %v1620
    %v1688 = vpop.f32.mrb[0].mxu0
    %v1689 = vadd.f32 0.0, %v1688
    %v1690 = vpop.f32.mrb[0].mxu0
    %1691 = vdwg.mxu0
    %v1693 = vrot.slane %v1689, 1
    %1694 = vrot.lane.b32.xlu0 %v1693, 1
    %v1695 = vpop.permute.xlu0 %1694
    %v1697 = vrot.slane %v1689, 2
    %1698 = vrot.lane.b32.xlu0 %v1697, 2
    %v1699 = vpop.permute.xlu0 %1698
    %v1701 = vrot.slane %v1689, 3
    %1702 = vrot.lane.b32.xlu0 %v1701, 3
    %v1703 = vpop.permute.xlu0 %1702
    %vm1705 = vcmask 7168
    %v1706 = vsel %vm1705, %v1689, %v1695
    %vm1707 = vcmask 15360
    %v1708 = vsel %vm1707, %v1706, %v1699
    %vm1709 = vcmask 23552
    %v1710 = vsel %vm1709, %v1708, %v1703
    %vm1711 = vcmask 28672
    %v1712 = vsel %vm1711, %v1710, -inf
    %1713 = vmax.xlane.f32.xlu0 %v1712
    %v1714 = vpop.xlane.xlu0 %1713
    %v1715 = vsub.f32 %v1710, %v1714
    %v1716 = vmul.f32 %v1715, 1.442695
    %v1717 = vpow.pop %v1716
    %v1718 = vsel %vm1711, %v1717, 0.0
    %1719 = vadd.xlane.f32.xlu0 %v1718
    %v1720 = vpop.xlane.xlu0 %1719
    %v1721 = vrcp.pop %v1720
    %v1722 = vmul.f32 %v1717, %v1721
    %1723 = vst.msk [vmem:[%s26] sm:$0x1f] %vm1711, %v1722
    %v1724 = vsel %vm1711, %v1722, 0.0
    %v1725 = vrot.slane %v1724, 4
    %v1726 = vadd.f32 %v1724, %v1725
    %v1727 = vrot.slane %v1726, 2
    %v1728 = vadd.f32 %v1726, %v1727
    %v1729 = vrot.slane %v1728, 1
    %v1730 = vadd.f32 %v1728, %v1729
    %v1731 = vlaneseq
    %v1732 = vshrl.u32 %v1731, 7
    %v1733 = vlaneseq
    %v1734 = vand.u32 %v1733, 127
    %v1735 = vsub.s32 %v1734, %v1732
    %vm1736 = vcmp.eq.s32.totalorder %v1735, 0
    %1738 = vset.pattern.permute.xlu0 0
    %1739 = vperm.xlu0 %1738, %v1730
    %v1740 = vpop.permute.xlu0 %1739
    %v1742 = vsel %vm1736, %v1740, 0.0
    %v1743 = vadd.f32 %v1742, 0.0
    %vm1744 = vcmp.eq.s32.totalorder %v1735, 1
    %1745 = vset.pattern.permute.xlu0 1
    %1746 = vperm.xlu0 %1745, %v1730
    %v1747 = vpop.permute.xlu0 %1746
    %v1749 = vsel %vm1744, %v1747, 0.0
    %v1750 = vadd.f32 %v1743, %v1749
    %vm1751 = vcmp.eq.s32.totalorder %v1735, 2
    %1752 = vset.pattern.permute.xlu0 2
    %1753 = vperm.xlu0 %1752, %v1730
    %v1754 = vpop.permute.xlu0 %1753
    %v1756 = vsel %vm1751, %v1754, 0.0
    %v1757 = vadd.f32 %v1750, %v1756
    %vm1758 = vcmp.eq.s32.totalorder %v1735, 3
    %1759 = vset.pattern.permute.xlu0 3
    %1760 = vperm.xlu0 %1759, %v1730
    %v1761 = vpop.permute.xlu0 %1760
    %v1763 = vsel %vm1758, %v1761, 0.0
    %v1764 = vadd.f32 %v1757, %v1763
    %v1766 = vsel %vm1534, %v1764, 0
    %1768 = vmatprep.subr.mxu0 0.0
    %1769 = vmatpush1.msra.mxu0 %v1531
    %1770 = vmatprep.subr.mxu0 0.0
    %1771 = vmatpush1.msra.mxu0 0.0
    %1772 = vmatprep.subr.mxu0 0.0
    %1773 = vmatpush1.msra.mxu0 0.0
    %1774 = vmatprep.subr.mxu0 0.0
    %1775 = vmatpush1.msra.mxu0 0.0
    %1776 = vmatprep.subr.mxu0 0.0
    %1777 = vmatpush1.msra.mxu0 0.0
    %1778 = vmatprep.subr.mxu0 0.0
    %1779 = vmatpush1.msra.mxu0 0.0
    %1780 = vmatprep.subr.mxu0 0.0
    %1781 = vmatpush1.msra.mxu0 0.0
    %1782 = vmatprep.subr.mxu0 0.0
    %1783 = vmatpush1.msra.mxu0 0.0
    %1784 = vmatprep.subr.mxu0 0.0
    %1785 = vmatpush1.msra.mxu0 0.0
    %1786 = vmatprep.subr.mxu0 0.0
    %1787 = vmatpush1.msra.mxu0 0.0
    %1788 = vmatprep.subr.mxu0 0.0
    %1789 = vmatpush1.msra.mxu0 0.0
    %1790 = vmatprep.subr.mxu0 0.0
    %1791 = vmatpush1.msra.mxu0 0.0
    %1792 = vmatprep.subr.mxu0 0.0
    %1793 = vmatpush1.msra.mxu0 0.0
    %1794 = vmatprep.subr.mxu0 0.0
    %1795 = vmatpush1.msra.mxu0 0.0
    %1796 = vmatprep.subr.mxu0 0.0
    %1797 = vmatpush1.msra.mxu0 0.0
    %1798 = vmatprep.subr.mxu0 0.0
    %1799 = vmatpush1.msra.mxu0 0.0
    %1800 = vmatprep.subr.mxu0 0.0
    %1801 = vmatpush1.msra.mxu0 0.0
    %1802 = vmatprep.subr.mxu0 0.0
    %1803 = vmatpush1.msra.mxu0 0.0
    %1804 = vmatprep.subr.mxu0 0.0
    %1805 = vmatpush1.msra.mxu0 0.0
    %1806 = vmatprep.subr.mxu0 0.0
    %1807 = vmatpush1.msra.mxu0 0.0
    %1808 = vmatprep.subr.mxu0 0.0
    %1809 = vmatpush1.msra.mxu0 0.0
    %1810 = vmatprep.subr.mxu0 0.0
    %1811 = vmatpush1.msra.mxu0 0.0
    %1812 = vmatprep.subr.mxu0 0.0
    %1813 = vmatpush1.msra.mxu0 0.0
    %1814 = vmatprep.subr.mxu0 0.0
    %1815 = vmatpush1.msra.mxu0 0.0
    %1816 = vmatprep.subr.mxu0 0.0
    %1817 = vmatpush1.msra.mxu0 0.0
    %1818 = vmatprep.subr.mxu0 0.0
    %1819 = vmatpush1.msra.mxu0 0.0
    %1820 = vmatprep.subr.mxu0 0.0
    %1821 = vmatpush1.msra.mxu0 0.0
    %1822 = vmatprep.subr.mxu0 0.0
    %1823 = vmatpush1.msra.mxu0 0.0
    %1824 = vmatprep.subr.mxu0 0.0
    %1825 = vmatpush1.msra.mxu0 0.0
    %1826 = vmatprep.subr.mxu0 0.0
    %1827 = vmatpush1.msra.mxu0 0.0
    %1828 = vmatprep.subr.mxu0 0.0
    %1829 = vmatpush1.msra.mxu0 0.0
    %1830 = vmatprep.subr.mxu0 0.0
    %1831 = vmatpush1.msra.mxu0 0.0
    %1832 = vmatprep.mubr.f32.mxu0 0.0
    %1833 = vmatmul.mubr.f32.gmra.mrb[0].mxu0 %v1766
    %v1834 = vpop.f32.mrb[0].mxu0
    %v1835 = vadd.f32 0.0, %v1834
    %v1836 = vpop.f32.mrb[0].mxu0
    %1837 = vdwg.mxu0
    %v1838 = vld [vmem:[%s16] sm:$0xff]
    %v1839 = vld [vmem:[%s17] sm:$0x1]
    %v1841 = vlaneseq
    %v1842 = vshrl.u32 %v1841, 7
    %v1843 = vsub.s32 0, %v1842
    %v1844 = vrot.slane %v1839, %v1843
    %v1847 = vsel %vm1534, %v1835, 0
    %1849 = vmatprep.subr.mxu0 0.0
    %1850 = vmatpush1.msra.mxu0 %v1838
    %1851 = vmatprep.subr.mxu0 0.0
    %1852 = vmatpush1.msra.mxu0 0.0
    %1853 = vmatprep.subr.mxu0 0.0
    %1854 = vmatpush1.msra.mxu0 0.0
    %1855 = vmatprep.subr.mxu0 0.0
    %1856 = vmatpush1.msra.mxu0 0.0
    %1857 = vmatprep.subr.mxu0 0.0
    %1858 = vmatpush1.msra.mxu0 0.0
    %1859 = vmatprep.subr.mxu0 0.0
    %1860 = vmatpush1.msra.mxu0 0.0
    %1861 = vmatprep.subr.mxu0 0.0
    %1862 = vmatpush1.msra.mxu0 0.0
    %1863 = vmatprep.subr.mxu0 0.0
    %1864 = vmatpush1.msra.mxu0 0.0
    %1865 = vmatprep.subr.mxu0 0.0
    %1866 = vmatpush1.msra.mxu0 0.0
    %1867 = vmatprep.subr.mxu0 0.0
    %1868 = vmatpush1.msra.mxu0 0.0
    %1869 = vmatprep.subr.mxu0 0.0
    %1870 = vmatpush1.msra.mxu0 0.0
    %1871 = vmatprep.subr.mxu0 0.0
    %1872 = vmatpush1.msra.mxu0 0.0
    %1873 = vmatprep.subr.mxu0 0.0
    %1874 = vmatpush1.msra.mxu0 0.0
    %1875 = vmatprep.subr.mxu0 0.0
    %1876 = vmatpush1.msra.mxu0 0.0
    %1877 = vmatprep.subr.mxu0 0.0
    %1878 = vmatpush1.msra.mxu0 0.0
    %1879 = vmatprep.subr.mxu0 0.0
    %1880 = vmatpush1.msra.mxu0 0.0
    %1881 = vmatprep.subr.mxu0 0.0
    %1882 = vmatpush1.msra.mxu0 0.0
    %1883 = vmatprep.subr.mxu0 0.0
    %1884 = vmatpush1.msra.mxu0 0.0
    %1885 = vmatprep.subr.mxu0 0.0
    %1886 = vmatpush1.msra.mxu0 0.0
    %1887 = vmatprep.subr.mxu0 0.0
    %1888 = vmatpush1.msra.mxu0 0.0
    %1889 = vmatprep.subr.mxu0 0.0
    %1890 = vmatpush1.msra.mxu0 0.0
    %1891 = vmatprep.subr.mxu0 0.0
    %1892 = vmatpush1.msra.mxu0 0.0
    %1893 = vmatprep.subr.mxu0 0.0
    %1894 = vmatpush1.msra.mxu0 0.0
    %1895 = vmatprep.subr.mxu0 0.0
    %1896 = vmatpush1.msra.mxu0 0.0
    %1897 = vmatprep.subr.mxu0 0.0
    %1898 = vmatpush1.msra.mxu0 0.0
    %1899 = vmatprep.subr.mxu0 0.0
    %1900 = vmatpush1.msra.mxu0 0.0
    %1901 = vmatprep.subr.mxu0 0.0
    %1902 = vmatpush1.msra.mxu0 0.0
    %1903 = vmatprep.subr.mxu0 0.0
    %1904 = vmatpush1.msra.mxu0 0.0
    %1905 = vmatprep.subr.mxu0 0.0
    %1906 = vmatpush1.msra.mxu0 0.0
    %1907 = vmatprep.subr.mxu0 0.0
    %1908 = vmatpush1.msra.mxu0 0.0
    %1909 = vmatprep.subr.mxu0 0.0
    %1910 = vmatpush1.msra.mxu0 0.0
    %1911 = vmatprep.subr.mxu0 0.0
    %1912 = vmatpush1.msra.mxu0 0.0
    %1913 = vmatprep.mubr.f32.mxu0 0.0
    %1914 = vmatmul.mubr.f32.gmra.mrb[0].mxu0 %v1847
    %v1915 = vpop.f32.mrb[0].mxu0
    %v1916 = vadd.f32 %v1844, %v1915
    %v1917 = vpop.f32.mrb[0].mxu0
    %1918 = vdwg.mxu0
    %v1919 = vxor.u32 %v1916, 2147483648
    %v1920 = vmul.f32 %v1919, 1.442695
    %v1921 = vpow.pop %v1920
    %v1922 = vadd.f32 %v1921, 1.0
    %v1923 = vrcp.pop %v1922
    %v1924 = vmul.f32 1.0, %v1923
    %v1925 = vtanh.pop %v1916
    %1927 = vrot.lane.b32.xlu0 %v1925, 112
    %v1928 = vpop.permute.xlu0 %1927
    %v1930 = vmul.f32 %v1924, %v1928
    %v1931 = vtanh.pop %v1930
    %1933 = vrot.lane.b32.xlu0 %v1931, 32
    %v1934 = vpop.permute.xlu0 %1933
    %v1936 = vmul.f32 %v1924, %v1934
    %v1937 = vld [vmem:[%s18] sm:$0xff]
    %v1938 = vld [vmem:[%s18 + $0x8] sm:$0xff]
    %v1939 = vld [vmem:[%s19] sm:$0x1]
    %v1941 = vlaneseq
    %v1942 = vshrl.u32 %v1941, 7
    %v1943 = vsub.s32 0, %v1942
    %v1944 = vrot.slane %v1939, %v1943
    %1947 = vrot.lane.b32.xlu0 %v1936, 96
    %v1948 = vpop.permute.xlu0 %1947
    %v1949 = vsel %vm1460, %v1948, 0
    %1951 = vmatprep.subr.mxu0 0.0
    %1952 = vmatpush1.msra.mxu0 %v1937
    %1953 = vmatprep.subr.mxu0 0.0
    %1954 = vmatpush1.msra.mxu0 %v1938
    %1955 = vmatprep.subr.mxu0 0.0
    %1956 = vmatpush1.msra.mxu0 0.0
    %1957 = vmatprep.subr.mxu0 0.0
    %1958 = vmatpush1.msra.mxu0 0.0
    %1959 = vmatprep.subr.mxu0 0.0
    %1960 = vmatpush1.msra.mxu0 0.0
    %1961 = vmatprep.subr.mxu0 0.0
    %1962 = vmatpush1.msra.mxu0 0.0
    %1963 = vmatprep.subr.mxu0 0.0
    %1964 = vmatpush1.msra.mxu0 0.0
    %1965 = vmatprep.subr.mxu0 0.0
    %1966 = vmatpush1.msra.mxu0 0.0
    %1967 = vmatprep.subr.mxu0 0.0
    %1968 = vmatpush1.msra.mxu0 0.0
    %1969 = vmatprep.subr.mxu0 0.0
    %1970 = vmatpush1.msra.mxu0 0.0
    %1971 = vmatprep.subr.mxu0 0.0
    %1972 = vmatpush1.msra.mxu0 0.0
    %1973 = vmatprep.subr.mxu0 0.0
    %1974 = vmatpush1.msra.mxu0 0.0
    %1975 = vmatprep.subr.mxu0 0.0
    %1976 = vmatpush1.msra.mxu0 0.0
    %1977 = vmatprep.subr.mxu0 0.0
    %1978 = vmatpush1.msra.mxu0 0.0
    %1979 = vmatprep.subr.mxu0 0.0
    %1980 = vmatpush1.msra.mxu0 0.0
    %1981 = vmatprep.subr.mxu0 0.0
    %1982 = vmatpush1.msra.mxu0 0.0
    %1983 = vmatprep.subr.mxu0 0.0
    %1984 = vmatpush1.msra.mxu0 0.0
    %1985 = vmatprep.subr.mxu0 0.0
    %1986 = vmatpush1.msra.mxu0 0.0
    %1987 = vmatprep.subr.mxu0 0.0
    %1988 = vmatpush1.msra.mxu0 0.0
    %1989 = vmatprep.subr.mxu0 0.0
    %1990 = vmatpush1.msra.mxu0 0.0
    %1991 = vmatprep.subr.mxu0 0.0
    %1992 = vmatpush1.msra.mxu0 0.0
    %1993 = vmatprep.subr.mxu0 0.0
    %1994 = vmatpush1.msra.mxu0 0.0
    %1995 = vmatprep.subr.mxu0 0.0
    %1996 = vmatpush1.msra.mxu0 0.0
    %1997 = vmatprep.subr.mxu0 0.0
    %1998 = vmatpush1.msra.mxu0 0.0
    %1999 = vmatprep.subr.mxu0 0.0
    %2000 = vmatpush1.msra.mxu0 0.0
    %2001 = vmatprep.subr.mxu0 0.0
    %2002 = vmatpush1.msra.mxu0 0.0
    %2003 = vmatprep.subr.mxu0 0.0
    %2004 = vmatpush1.msra.mxu0 0.0
    %2005 = vmatprep.subr.mxu0 0.0
    %2006 = vmatpush1.msra.mxu0 0.0
    %2007 = vmatprep.subr.mxu0 0.0
    %2008 = vmatpush1.msra.mxu0 0.0
    %2009 = vmatprep.subr.mxu0 0.0
    %2010 = vmatpush1.msra.mxu0 0.0
    %2011 = vmatprep.subr.mxu0 0.0
    %2012 = vmatpush1.msra.mxu0 0.0
    %2013 = vmatprep.subr.mxu0 0.0
    %2014 = vmatpush1.msra.mxu0 0.0
    %2015 = vmatprep.mubr.f32.mxu0 0.0
    %2016 = vmatmul.mubr.f32.gmra.mrb[0].mxu0 %v1949
    %v2017 = vpop.f32.mrb[0].mxu0
    %v2018 = vadd.f32 %v1944, %v2017
    %v2019 = vpop.f32.mrb[0].mxu0
    %2020 = vdwg.mxu0
    %v2021 = vxor.u32 %v2018, 2147483648
    %v2022 = vmul.f32 %v2021, 1.442695
    %v2023 = vpow.pop %v2022
    %v2024 = vadd.f32 %v2023, 1.0
    %v2025 = vrcp.pop %v2024
    %v2026 = vmul.f32 1.0, %v2025
    %v2027 = vtanh.pop %v2018
    %2029 = vrot.lane.b32.xlu0 %v2027, 112
    %v2030 = vpop.permute.xlu0 %2029
    %v2032 = vmul.f32 %v2026, %v2030
    %v2033 = vtanh.pop %v2032
    %2035 = vrot.lane.b32.xlu0 %v2033, 32
    %v2036 = vpop.permute.xlu0 %2035
    %v2038 = vmul.f32 %v2026, %v2036
    %v2039 = vld [vmem:[%s20] sm:$0xff]
    %v2040 = vld [vmem:[%s20 + $0x8] sm:$0xff]
    %v2041 = vld [vmem:[%s21] sm:$0x1]
    %v2043 = vlaneseq
    %v2044 = vshrl.u32 %v2043, 7
    %v2045 = vsub.s32 0, %v2044
    %v2046 = vrot.slane %v2041, %v2045
    %2049 = vrot.lane.b32.xlu0 %v2038, 96
    %v2050 = vpop.permute.xlu0 %2049
    %v2051 = vsel %vm1460, %v2050, 0
    %2053 = vmatprep.subr.mxu0 0.0
    %2054 = vmatpush1.msra.mxu0 %v2039
    %2055 = vmatprep.subr.mxu0 0.0
    %2056 = vmatpush1.msra.mxu0 %v2040
    %2057 = vmatprep.subr.mxu0 0.0
    %2058 = vmatpush1.msra.mxu0 0.0
    %2059 = vmatprep.subr.mxu0 0.0
    %2060 = vmatpush1.msra.mxu0 0.0
    %2061 = vmatprep.subr.mxu0 0.0
    %2062 = vmatpush1.msra.mxu0 0.0
    %2063 = vmatprep.subr.mxu0 0.0
    %2064 = vmatpush1.msra.mxu0 0.0
    %2065 = vmatprep.subr.mxu0 0.0
    %2066 = vmatpush1.msra.mxu0 0.0
    %2067 = vmatprep.subr.mxu0 0.0
    %2068 = vmatpush1.msra.mxu0 0.0
    %2069 = vmatprep.subr.mxu0 0.0
    %2070 = vmatpush1.msra.mxu0 0.0
    %2071 = vmatprep.subr.mxu0 0.0
    %2072 = vmatpush1.msra.mxu0 0.0
    %2073 = vmatprep.subr.mxu0 0.0
    %2074 = vmatpush1.msra.mxu0 0.0
    %2075 = vmatprep.subr.mxu0 0.0
    %2076 = vmatpush1.msra.mxu0 0.0
    %2077 = vmatprep.subr.mxu0 0.0
    %2078 = vmatpush1.msra.mxu0 0.0
    %2079 = vmatprep.subr.mxu0 0.0
    %2080 = vmatpush1.msra.mxu0 0.0
    %2081 = vmatprep.subr.mxu0 0.0
    %2082 = vmatpush1.msra.mxu0 0.0
    %2083 = vmatprep.subr.mxu0 0.0
    %2084 = vmatpush1.msra.mxu0 0.0
    %2085 = vmatprep.subr.mxu0 0.0
    %2086 = vmatpush1.msra.mxu0 0.0
    %2087 = vmatprep.subr.mxu0 0.0
    %2088 = vmatpush1.msra.mxu0 0.0
    %2089 = vmatprep.subr.mxu0 0.0
    %2090 = vmatpush1.msra.mxu0 0.0
    %2091 = vmatprep.subr.mxu0 0.0
    %2092 = vmatpush1.msra.mxu0 0.0
    %2093 = vmatprep.subr.mxu0 0.0
    %2094 = vmatpush1.msra.mxu0 0.0
    %2095 = vmatprep.subr.mxu0 0.0
    %2096 = vmatpush1.msra.mxu0 0.0
    %2097 = vmatprep.subr.mxu0 0.0
    %2098 = vmatpush1.msra.mxu0 0.0
    %2099 = vmatprep.subr.mxu0 0.0
    %2100 = vmatpush1.msra.mxu0 0.0
    %2101 = vmatprep.subr.mxu0 0.0
    %2102 = vmatpush1.msra.mxu0 0.0
    %2103 = vmatprep.subr.mxu0 0.0
    %2104 = vmatpush1.msra.mxu0 0.0
    %2105 = vmatprep.subr.mxu0 0.0
    %2106 = vmatpush1.msra.mxu0 0.0
    %2107 = vmatprep.subr.mxu0 0.0
    %2108 = vmatpush1.msra.mxu0 0.0
    %2109 = vmatprep.subr.mxu0 0.0
    %2110 = vmatpush1.msra.mxu0 0.0
    %2111 = vmatprep.subr.mxu0 0.0
    %2112 = vmatpush1.msra.mxu0 0.0
    %2113 = vmatprep.subr.mxu0 0.0
    %2114 = vmatpush1.msra.mxu0 0.0
    %2115 = vmatprep.subr.mxu0 0.0
    %2116 = vmatpush1.msra.mxu0 0.0
    %2117 = vmatprep.mubr.f32.mxu0 0.0
    %2118 = vmatmul.mubr.f32.gmra.mrb[0].mxu0 %v2051
    %v2119 = vpop.f32.mrb[0].mxu0
    %v2120 = vadd.f32 %v2046, %v2119
    %v2121 = vpop.f32.mrb[0].mxu0
    %2122 = vdwg.mxu0
    %v2123 = vld [vmem:[%s22] sm:$0xff]
    %v2124 = vld [vmem:[#allocation2] sm:$0x1]
    %v2126 = vlaneseq
    %v2127 = vshrl.u32 %v2126, 7
    %v2128 = vsub.s32 0, %v2127
    %v2129 = vrot.slane %v2124, %v2128
    %2130 = vset.pattern.permute.xlu0 0
    %2131 = vperm.xlu0 %2130, %v2129
    %v2132 = vpop.permute.xlu0 %2131
    %v2135 = vsel %vm1534, %v2120, 0
    %2137 = vmatprep.subr.mxu0 0.0
    %2138 = vmatpush1.msra.mxu0 %v2123
    %2139 = vmatprep.subr.mxu0 0.0
    %2140 = vmatpush1.msra.mxu0 0.0
    %2141 = vmatprep.subr.mxu0 0.0
    %2142 = vmatpush1.msra.mxu0 0.0
    %2143 = vmatprep.subr.mxu0 0.0
    %2144 = vmatpush1.msra.mxu0 0.0
    %2145 = vmatprep.subr.mxu0 0.0
    %2146 = vmatpush1.msra.mxu0 0.0
    %2147 = vmatprep.subr.mxu0 0.0
    %2148 = vmatpush1.msra.mxu0 0.0
    %2149 = vmatprep.subr.mxu0 0.0
    %2150 = vmatpush1.msra.mxu0 0.0
    %2151 = vmatprep.subr.mxu0 0.0
    %2152 = vmatpush1.msra.mxu0 0.0
    %2153 = vmatprep.subr.mxu0 0.0
    %2154 = vmatpush1.msra.mxu0 0.0
    %2155 = vmatprep.subr.mxu0 0.0
    %2156 = vmatpush1.msra.mxu0 0.0
    %2157 = vmatprep.subr.mxu0 0.0
    %2158 = vmatpush1.msra.mxu0 0.0
    %2159 = vmatprep.subr.mxu0 0.0
    %2160 = vmatpush1.msra.mxu0 0.0
    %2161 = vmatprep.subr.mxu0 0.0
    %2162 = vmatpush1.msra.mxu0 0.0
    %2163 = vmatprep.subr.mxu0 0.0
    %2164 = vmatpush1.msra.mxu0 0.0
    %2165 = vmatprep.subr.mxu0 0.0
    %2166 = vmatpush1.msra.mxu0 0.0
    %2167 = vmatprep.subr.mxu0 0.0
    %2168 = vmatpush1.msra.mxu0 0.0
    %2169 = vmatprep.subr.mxu0 0.0
    %2170 = vmatpush1.msra.mxu0 0.0
    %2171 = vmatprep.subr.mxu0 0.0
    %2172 = vmatpush1.msra.mxu0 0.0
    %2173 = vmatprep.subr.mxu0 0.0
    %2174 = vmatpush1.msra.mxu0 0.0
    %2175 = vmatprep.subr.mxu0 0.0
    %2176 = vmatpush1.msra.mxu0 0.0
    %2177 = vmatprep.subr.mxu0 0.0
    %2178 = vmatpush1.msra.mxu0 0.0
    %2179 = vmatprep.subr.mxu0 0.0
    %2180 = vmatpush1.msra.mxu0 0.0
    %2181 = vmatprep.subr.mxu0 0.0
    %2182 = vmatpush1.msra.mxu0 0.0
    %2183 = vmatprep.subr.mxu0 0.0
    %2184 = vmatpush1.msra.mxu0 0.0
    %2185 = vmatprep.subr.mxu0 0.0
    %2186 = vmatpush1.msra.mxu0 0.0
    %2187 = vmatprep.subr.mxu0 0.0
    %2188 = vmatpush1.msra.mxu0 0.0
    %2189 = vmatprep.subr.mxu0 0.0
    %2190 = vmatpush1.msra.mxu0 0.0
    %2191 = vmatprep.subr.mxu0 0.0
    %2192 = vmatpush1.msra.mxu0 0.0
    %2193 = vmatprep.subr.mxu0 0.0
    %2194 = vmatpush1.msra.mxu0 0.0
    %2195 = vmatprep.subr.mxu0 0.0
    %2196 = vmatpush1.msra.mxu0 0.0
    %2197 = vmatprep.subr.mxu0 0.0
    %2198 = vmatpush1.msra.mxu0 0.0
    %2199 = vmatprep.subr.mxu0 0.0
    %2200 = vmatpush1.msra.mxu0 0.0
    %2201 = vmatprep.mubr.f32.mxu0 0.0
    %2202 = vmatmul.mubr.f32.gmra.mrb[0].mxu0 %v2135
    %v2203 = vpop.f32.mrb[0].mxu0
    %v2204 = vadd.f32 %v2132, %v2203
    %v2205 = vpop.f32.mrb[0].mxu0
    %2206 = vdwg.mxu0
    %v2207 = vxor.u32 %v2204, 2147483648
    %v2208 = vmul.f32 %v2207, 1.442695
    %v2209 = vpow.pop %v2208
    %v2210 = vadd.f32 %v2209, 1.0
    %v2211 = vrcp.pop %v2210
    %v2212 = vmul.f32 1.0, %v2211
    %2213 = vst [vmem:[#allocation3] sm:$0x1f] %v2212
    // Predicated region
    $region98: #{tpu_custom_call.1} parent=1 // pred_check
      _
    $region99: #{tpu_custom_call.1} parent=1 // pred_check_branch
      %2215 = sbr.rel (0) target = $region101
    $region100: #{tpu_custom_call.1} parent=1 // pred_region
      %s2217 = ssub.s32 128, 128
      %2218 = vsyncadd [#allocation4], %s2217
      %s2220 = sshll.u32 [#allocation3], 4
      %s2221 = int_to_ptr.vmem [resolvable:$true] %s2220
      %2223 = dma.vmem_to_hbm [thread:$0]  %s2221, 128, %s24, [#allocation4]
    $region101: #{tpu_custom_call.1} parent=1 // pred_fallthru
      _
    // Predicated region
    $region102: #{tpu_custom_call.1} parent=1 // pred_check
      _
    $region103: #{tpu_custom_call.1} parent=1 // pred_check_branch
      %2225 = sbr.rel (0) target = $region105
    $region104: #{tpu_custom_call.1} parent=1 // pred_region
      %s2227 = ssub.s32 128, 128
      %2228 = vsyncadd [#allocation6], %s2227
      %s2230 = sshll.u32 [#allocation5], 4
      %s2231 = int_to_ptr.vmem [resolvable:$true] %s2230
      %2233 = dma.vmem_to_hbm [thread:$0]  %s2231, 128, %s25, [#allocation6]
    $region105: #{tpu_custom_call.1} parent=1 // pred_fallthru
      _
    // Predicated region
    $region106: #{tpu_custom_call.1} parent=1 // pred_check
      _
    $region107: #{tpu_custom_call.1} parent=1 // pred_check_branch
      %2235 = sbr.rel (0) target = $region109
    $region108: #{tpu_custom_call.1} parent=1 // pred_region
      _
    $region109: #{tpu_custom_call.1} parent=1 // pred_fallthru
      _
    // Predicated region
    $region110: #{tpu_custom_call.1} parent=1 // pred_check
      _
    $region111: #{tpu_custom_call.1} parent=1 // pred_check_branch
      %2237 = sbr.rel (0) target = $region113
    $region112: #{tpu_custom_call.1} parent=1 // pred_region
      %2238 = dma.done [#allocation4], 128
    $region113: #{tpu_custom_call.1} parent=1 // pred_fallthru
      _
    // Predicated region
    $region114: #{tpu_custom_call.1} parent=1 // pred_check
      _
    $region115: #{tpu_custom_call.1} parent=1 // pred_check_branch
      %2240 = sbr.rel (0) target = $region117
    $region116: #{tpu_custom_call.1} parent=1 // pred_region
      %2241 = dma.done [#allocation6], 128
    $region117: #{tpu_custom_call.1} parent=1 // pred_fallthru
      _
    // Predicated region
    $region118: #{tpu_custom_call.1} parent=1 // pred_check
      _
    $region119: #{tpu_custom_call.1} parent=1 // pred_check_branch
      %2243 = sbr.rel (0) target = $region121
    $region120: #{tpu_custom_call.1} parent=1 // pred_region
      _
    $region121: #{tpu_custom_call.1} parent=1 // pred_fallthru
      _
    %2244 = vsyncpa [#allocation4], 1
    %2245 = vsyncpa [#allocation6], 1

</llo_original>
